<compile_context>
chip_gen: v7x
topology: tpu7x:2x2x1
jax: 0.10.0
libtpu: 0.0.40
codegen_flags: <defaults>
</compile_context>

<pallas_src>
import jax
import jax.numpy as jnp
import numpy as np
from jax import lax
from jax.experimental import pallas as pl
from jax.experimental.pallas import tpu as pltpu


# ------------------------------ fused kernel ------------------------------- #

def dyrep_fused_kernel(uv_ref, scal_ref, pidx_ref, pf_ref,
                       f_ref, s_ref, a_ref, wstack_ref, wom_ref, rows_ref,
                       out_ref, fout_ref):
    # uv_ref   : SMEM (2,)  int32   [u, v]
    # scal_ref : SMEM (4,)  f32     [omega0_b, omega1_b, psi0, psi1]
    # pidx_ref : VMEM (P, 2) int32  [left, right] node index per intensity pair
    # pf_ref   : VMEM (P, 8) f32    [et0, et1, w_surv, w_lam, dt_u, dt_v, 0, 0]
    # f_ref    : VMEM (N, E) f32    node embeddings (aliased to fout_ref)
    # s_ref    : VMEM (N, N) f32    S matrix
    # a_ref    : VMEM (N, N) f32    adjacency A
    # wstack   : VMEM (3E, E) f32   [W_h^T ; W_struct^T ; W_rec^T]
    # wom_ref  : VMEM (E, 4) f32    [o0[:E] | o1[:E] | o0[E:] | o1[E:]]
    # rows_ref : VMEM (3, E) f32    [W_h bias ; Ws_b+Wr_b+Wt_b ; W_t weight row]
    # out_ref  : VMEM (1, 128) f32  lane-dense [lambda_t, L_surv, 0, ...]
    # fout_ref : VMEM (N, E) f32    updated embeddings (aliased with f_ref)
    N, E = f_ref.shape
    P = pidx_ref.shape[0]
    NEG = jnp.float32(-1e30)

    f = f_ref[...]                                                   # (N, E)

    # ---------------- intensities: lambda_t + survival terms ----------------
    # project every node through both halves of omega_0 / omega_1 at once
    g_all = jnp.dot(f, wom_ref[...],
                    preferred_element_type=jnp.float32)              # (N, 4)
    node_iota = lax.broadcasted_iota(jnp.int32, (P, N), 1)
    oh_l = (node_iota == pidx_ref[:, 0:1]).astype(jnp.float32)       # (P, N)
    oh_r = (node_iota == pidx_ref[:, 1:2]).astype(jnp.float32)
    gl = jnp.dot(oh_l, g_all, preferred_element_type=jnp.float32)    # (P, 4)
    gr = jnp.dot(oh_r, g_all, preferred_element_type=jnp.float32)    # (P, 4)

    b0 = scal_ref[0]
    b1 = scal_ref[1]
    psi0 = scal_ref[2]
    psi1 = scal_ref[3]
    et0 = pf_ref[:, 0:1]
    et1 = pf_ref[:, 1:2]
    g_sel = (et0 * (gl[:, 0:1] + gr[:, 2:3] + b0)
             + et1 * (gl[:, 1:2] + gr[:, 3:4] + b1))                 # (P, 1)
    psi_sel = et0 * psi0 + et1 * psi1                                # (P, 1)

    # stable softplus: psi * (max(x,0) + log(1 + exp(-|x|))), x = g / psi
    x = g_sel * pl.reciprocal(psi_sel, approx=True)
    softp = jnp.maximum(x, 0.0) + jnp.log(1.0 + jnp.exp(-jnp.abs(x)))
    inten = psi_sel * softp                                          # (P, 1)
    lam = jnp.sum(inten * pf_ref[:, 3:4])                            # lambda_t
    lsurv = jnp.sum(inten * pf_ref[:, 2:3])                          # L_surv

    # ---------------- structural attention + z_new rows ----------------
    u = uv_ref[0]
    v = uv_ref[1]

    # lane-major S / A rows for u and v, masked stable softmax with lane reduces
    s_rows = jnp.concatenate([s_ref[pl.ds(u, 1), :],
                              s_ref[pl.ds(v, 1), :]], axis=0)        # (2, N)
    a_rows = jnp.concatenate([a_ref[pl.ds(u, 1), :],
                              a_ref[pl.ds(v, 1), :]], axis=0)        # (2, N)
    mask_r = (a_rows > 0.0).astype(jnp.float32)                      # (2, N)
    m = jnp.max(jnp.where(mask_r > 0.0, s_rows, NEG),
                axis=1, keepdims=True)                               # (2, 1)
    e = jnp.exp(jnp.minimum(s_rows - m, 0.0)) * mask_r               # (2, N)
    denom = jnp.sum(e, axis=1, keepdims=True)                        # (2, 1)
    q_rows = e * pl.reciprocal(jnp.maximum(denom, jnp.float32(1e-20)),
                               approx=True)                          # (2, N)

    # one small transpose to get q / mask as per-node columns
    qm_t = jnp.concatenate([q_rows, mask_r], axis=0).T               # (N, 4)

    h_all = jnp.dot(f, wstack_ref[0:E, :],
                    preferred_element_type=jnp.float32) + rows_ref[0:1, :]  # (N, E)

    def pooled(col):
        qh = jax.nn.sigmoid(qm_t[:, col:col + 1] * h_all)            # (N, E)
        return jnp.max(jnp.where(qm_t[:, col + 2:col + 3] > 0.0, qh, NEG),
                       axis=0, keepdims=True)                        # (1, E)

    feat_u = f_ref[pl.ds(u, 1), :]                                   # (1, E)
    feat_v = f_ref[pl.ds(v, 1), :]
    has_u = jnp.sum(mask_r[0:1, :]) > 0.0
    has_v = jnp.sum(mask_r[1:2, :]) > 0.0
    h_u = jnp.where(has_u, pooled(0), feat_u)                        # h_u_struct
    h_v = jnp.where(has_v, pooled(1), feat_v)                        # h_v_struct

    # z_new[u] uses h_v_struct, z_new[v] uses h_u_struct; fuse W_struct & W_rec
    cat = jnp.concatenate([jnp.concatenate([h_v, h_u], axis=0),
                           jnp.concatenate([feat_u, feat_v], axis=0)],
                          axis=1)                                    # (2, 2E)
    wt_row = rows_ref[2:3, :]                                        # (1, E)
    dts = pf_ref[0:1, 4:6]                                           # (1, 2) [dt_u, dt_v]
    h3 = jnp.concatenate([dts[:, 0:1] * wt_row,
                          dts[:, 1:2] * wt_row], axis=0)             # (2, E)
    z = jax.nn.sigmoid(jnp.dot(cat, wstack_ref[E:3 * E, :],
                               preferred_element_type=jnp.float32)
                       + rows_ref[1:2, :] + h3)                      # (2, E)

    # write-through of f (aliased buffer) + in-place row updates
    fout_ref[...] = f
    fout_ref[pl.ds(u, 1), :] = z[0:1, :]
    fout_ref[pl.ds(v, 1), :] = z[1:2, :]

    lane = lax.broadcasted_iota(jnp.int32, out_ref.shape, 1)
    out_ref[...] = jnp.where(lane == 0, lam,
                             jnp.where(lane == 1, lsurv, 0.0))


# --------------------- one-time parameter preparation ----------------------- #

def prepare_dyrep_params(params):
    E = params["Wh_w"].shape[0]
    w_stack = jnp.concatenate([params["Wh_w"].T,
                               params["Ws_w"].T,
                               params["Wr_w"].T], axis=0).astype(jnp.float32)   # (3E, E)
    o0 = params["omega0_w"][0]
    o1 = params["omega1_w"][0]
    w_om = jnp.stack([o0[:E], o1[:E], o0[E:], o1[E:]],
                     axis=1).astype(jnp.float32)                                # (E, 4)
    rows = jnp.stack([params["Wh_b"],
                      params["Ws_b"] + params["Wr_b"] + params["Wt_b"],
                      params["Wt_w"][:, 0]], axis=0).astype(jnp.float32)        # (3, E)
    scal = jnp.stack([params["omega0_b"][0], params["omega1_b"][0],
                      params["psi"][0], params["psi"][1]]).astype(jnp.float32)  # (4,)
    return dict(w_stack=w_stack, w_om=w_om, rows=rows, scal=scal)


# ------------------------------ JAX wrapper -------------------------------- #

def dyrep_forward(prep, f, S, A, event, partners_for_u, partners_for_v,
                  dt_u, dt_v, n_survive):
    u, v, etype = event
    N, E = f.shape
    P = 1 + 4 * n_survive
    p_pad = max(8, ((P + 7) // 8) * 8)          # pad pair rows to a sublane multiple

    left, right, ets = [u], [v], [etype]
    for s in range(n_survive):
        ou = partners_for_u[s]
        ov = partners_for_v[s]
        left += [u, ov, u, ov]
        right += [ou, v, ou, v]
        ets += [0, 0, 1, 1]

    pair_int = np.zeros((p_pad, 2), np.int32)
    pair_int[:P, 0] = left
    pair_int[:P, 1] = right
    pair_f = np.zeros((p_pad, 8), np.float32)
    pair_f[np.arange(P), np.asarray(ets)] = 1.0   # event-type one-hot
    pair_f[P:, 0] = 1.0                           # pad rows: benign type-0 pair, zero weight
    pair_f[1:P, 2] = 1.0 / n_survive              # survival weights
    pair_f[0, 3] = 1.0                            # lambda_t selector
    pair_f[0, 4] = dt_u
    pair_f[0, 5] = dt_v

    uv = jnp.asarray([u, v], dtype=jnp.int32)

    smem = pl.BlockSpec(memory_space=pltpu.MemorySpace.SMEM)
    vmem = pl.BlockSpec(memory_space=pltpu.MemorySpace.VMEM)

    out_row, z_new = pl.pallas_call(
        dyrep_fused_kernel,
        out_shape=(jax.ShapeDtypeStruct((1, 128), jnp.float32),
                   jax.ShapeDtypeStruct((N, E), jnp.float32)),
        in_specs=[smem, smem] + [vmem] * 8,
        out_specs=(vmem, vmem),
        input_output_aliases={4: 1},              # f updated in place (rows u, v)
    )(uv, prep["scal"], jnp.asarray(pair_int), jnp.asarray(pair_f),
      f, S, A, prep["w_stack"], prep["w_om"], prep["rows"])

    lambda_t = out_row[0, 0]
    L_surv = out_row[0, 1]
    return lambda_t, L_surv, z_new


# --------------------------- pure-JAX reference ----------------------------- #

def reference_forward(params, f, S, A, event, partners_for_u, partners_for_v,
                      dt_u, dt_v, n_survive):
    u, v, etype = event

    def intensity(x, y, e):
        cat = jnp.concatenate([x, y])
        if e == 0:
            g = cat @ params["omega0_w"][0] + params["omega0_b"][0]
            psi = params["psi"][0]
        else:
            g = cat @ params["omega1_w"][0] + params["omega1_b"][0]
            psi = params["psi"][1]
        return psi * jnp.log(1.0 + jnp.exp(g / psi))

    lambda_t = intensity(f[u], f[v], etype)
    surv = jnp.float32(0.0)
    for s in range(n_survive):
        ou, ov = partners_for_u[s], partners_for_v[s]
        surv = surv + intensity(f[u], f[ou], 0) + intensity(f[ov], f[v], 0)
        surv = surv + intensity(f[u], f[ou], 1) + intensity(f[ov], f[v], 1)
    L_surv = surv / n_survive

    A_np = np.asarray(A)

    def h_struct(node):
        nbr = np.where(A_np[node] > 0)[0]
        if nbr.size == 0:
            return f[node]
        sv = S[node, nbr]
        q = jnp.exp(sv) / jnp.sum(jnp.exp(sv))
        h_i = f[nbr] @ params["Wh_w"].T + params["Wh_b"]
        qh = jax.nn.sigmoid(q[:, None] * h_i)
        return jnp.max(qh, axis=0)

    h_u, h_v = h_struct(u), h_struct(v)

    def upd(h_other, feat, dt):
        h1 = h_other @ params["Ws_w"].T + params["Ws_b"]
        h2 = feat @ params["Wr_w"].T + params["Wr_b"]
        h3 = dt * params["Wt_w"][:, 0] + params["Wt_b"]
        return jax.nn.sigmoid(h1 + h2 + h3)

    z_u = upd(h_v, f[u], dt_u)
    z_v = upd(h_u, f[v], dt_v)
    z_new = f.at[u].set(z_u).at[v].set(z_v)
    return lambda_t, L_surv, z_new


# ---------------------------------- main ------------------------------------ #

if __name__ == "__main__":
    N = 32          # number of graph nodes (code implies N == embed_size)
    E = 32          # embed_size
    N_SURVIVE = 4

    key = jax.random.PRNGKey(0)
    ks = jax.random.split(key, 12)

    def lin(k, out_dim, in_dim, scale=0.1):
        wk, bk = jax.random.split(k)
        return (scale * jax.random.normal(wk, (out_dim, in_dim), jnp.float32),
                scale * jax.random.normal(bk, (out_dim,), jnp.float32))

    Wh_w, Wh_b = lin(ks[0], E, E)
    Ws_w, Ws_b = lin(ks[1], E, E)
    Wr_w, Wr_b = lin(ks[2], E, E)
    o0_w, o0_b = lin(ks[3], 1, 2 * E)
    o1_w, o1_b = lin(ks[4], 1, 2 * E)
    Wt_w, Wt_b = lin(ks[5], E, 1)
    params = dict(Wh_w=Wh_w, Wh_b=Wh_b, Ws_w=Ws_w, Ws_b=Ws_b,
                  Wr_w=Wr_w, Wr_b=Wr_b,
                  omega0_w=o0_w, omega0_b=o0_b,
                  omega1_w=o1_w, omega1_b=o1_b,
                  Wt_w=Wt_w, Wt_b=Wt_b,
                  psi=0.5 * jnp.ones((2,), jnp.float32))

    # states: node features f, S matrix, adjacency A (symmetric, zero diag)
    f = 0.1 * jax.random.normal(ks[6], (N, E), jnp.float32)
    S = 0.1 * jax.random.normal(ks[7], (N, N), jnp.float32)
    Ab = jax.random.uniform(ks[8], (N, N)) < 0.15
    Ab = jnp.logical_or(Ab, Ab.T) & ~jnp.eye(N, dtype=bool)
    A = Ab.astype(jnp.float32)

    # event = (u, v, time, event_type); time handling is python glue
    u, v, etype = 3, 7, 0
    event = (u, v, etype)
    begin_t, event_t = 0.0, 7200.0
    node_time_u, node_time_v = 1800.0, 0.0
    has_u = bool(np.asarray(A)[u].sum() > 0)
    has_v = bool(np.asarray(A)[v].sum() > 0)
    dt_u = (event_t - (node_time_u if has_u else begin_t)) / 3600.0
    dt_v = (event_t - (node_time_v if has_v else begin_t)) / 3600.0

    # deterministic survival "other" nodes (avoid u, v)
    partners_for_u = [1, 2, 4, 5]
    partners_for_v = [6, 8, 9, 10]

    # pure-JAX reference (computed first; the kernel call donates/aliases f)
    lam_r, lsurv_r, z_r = reference_forward(params, f, S, A, event,
                                            partners_for_u, partners_for_v,
                                            dt_u, dt_v, N_SURVIVE)
    jax.block_until_ready((lam_r, lsurv_r, z_r))

    prep = prepare_dyrep_params(params)      # one-time weight packing (hoisted)

    lam, lsurv, z_new = dyrep_forward(prep, f, S, A, event,
                                      partners_for_u, partners_for_v,
                                      dt_u, dt_v, N_SURVIVE)
    jax.block_until_ready((lam, lsurv, z_new))

    assert np.allclose(np.asarray(lam).ravel(), np.asarray(lam_r).ravel(),
                       atol=1e-2, rtol=1e-2)
    assert np.allclose(np.asarray(lsurv).ravel(), np.asarray(lsurv_r).ravel(),
                       atol=1e-2, rtol=1e-2)
    assert np.allclose(np.asarray(z_new), np.asarray(z_r), atol=1e-2, rtol=1e-2)

    print("KERNEL_OK")
</pallas_src>

<mosaic_0001>
module attributes {stable_mosaic.version = 11 : i64} {
  func.func @dyrep_fused_kernel(%arg0: memref<2xi32, #tpu.memory_space<smem>>, %arg1: memref<4xf32, #tpu.memory_space<smem>>, %arg2: memref<24x2xi32, #tpu.memory_space<vmem>>, %arg3: memref<24x8xf32, #tpu.memory_space<vmem>>, %arg4: memref<32x32xf32, #tpu.memory_space<vmem>>, %arg5: memref<32x32xf32, #tpu.memory_space<vmem>>, %arg6: memref<32x32xf32, #tpu.memory_space<vmem>>, %arg7: memref<96x32xf32, #tpu.memory_space<vmem>>, %arg8: memref<32x4xf32, #tpu.memory_space<vmem>>, %arg9: memref<3x32xf32, #tpu.memory_space<vmem>>, %arg10: memref<1x128xf32, #tpu.memory_space<vmem>>, %arg11: memref<32x32xf32, #tpu.memory_space<vmem>>) attributes {dimension_semantics = [], scalar_prefetch = 0 : i64, scratch_operands = 0 : i64, tpu.core_type = #tpu.core_type<tc>} {
    %c0 = arith.constant 0 : index
    %c0_0 = arith.constant 0 : index
    %0 = vector.load %arg4[%c0, %c0_0] : memref<32x32xf32, #tpu.memory_space<vmem>>, vector<32x32xf32>
    %c0_1 = arith.constant 0 : index
    %c0_2 = arith.constant 0 : index
    %1 = vector.load %arg8[%c0_1, %c0_2] : memref<32x4xf32, #tpu.memory_space<vmem>>, vector<32x4xf32>
    %cst = arith.constant dense<0.000000e+00> : vector<32x4xf32>
    %2 = tpu.matmul %0, %1, %cst {dimension_numbers = #tpu.dot_dimension_numbers<[1], [0], [0], [1], [0, 0, 1, 1], [], []>} : vector<32x32xf32>, vector<32x4xf32>, vector<32x4xf32> -> vector<32x4xf32>
    %3 = tpu.iota {dimensions = array<i32: 1>} : vector<24x32xi32>
    %c0_3 = arith.constant 0 : index
    %c0_4 = arith.constant 0 : index
    %4 = vector.load %arg2[%c0_3, %c0_4] : memref<24x2xi32, #tpu.memory_space<vmem>>, vector<24x1xi32>
    %5 = vector.broadcast %4 : vector<24x1xi32> to vector<24x32xi32>
    %6 = arith.cmpi eq, %3, %5 : vector<24x32xi32>
    %7 = arith.extui %6 : vector<24x32xi1> to vector<24x32xi32>
    %8 = arith.sitofp %7 : vector<24x32xi32> to vector<24x32xf32>
    %c0_5 = arith.constant 0 : index
    %c1 = arith.constant 1 : index
    %9 = vector.load %arg2[%c0_5, %c1] : memref<24x2xi32, #tpu.memory_space<vmem>>, vector<24x1xi32>
    %10 = vector.broadcast %9 : vector<24x1xi32> to vector<24x32xi32>
    %11 = arith.cmpi eq, %3, %10 : vector<24x32xi32>
    %12 = arith.extui %11 : vector<24x32xi1> to vector<24x32xi32>
    %13 = arith.sitofp %12 : vector<24x32xi32> to vector<24x32xf32>
    %cst_6 = arith.constant dense<0.000000e+00> : vector<24x4xf32>
    %14 = tpu.matmul %8, %2, %cst_6 {dimension_numbers = #tpu.dot_dimension_numbers<[1], [0], [0], [1], [0, 0, 1, 1], [], []>} : vector<24x32xf32>, vector<32x4xf32>, vector<24x4xf32> -> vector<24x4xf32>
    %cst_7 = arith.constant dense<0.000000e+00> : vector<24x4xf32>
    %15 = tpu.matmul %13, %2, %cst_7 {dimension_numbers = #tpu.dot_dimension_numbers<[1], [0], [0], [1], [0, 0, 1, 1], [], []>} : vector<24x32xf32>, vector<32x4xf32>, vector<24x4xf32> -> vector<24x4xf32>
    %c0_8 = arith.constant 0 : index
    %16 = memref.load %arg1[%c0_8] : memref<4xf32, #tpu.memory_space<smem>>
    %c1_9 = arith.constant 1 : index
    %17 = memref.load %arg1[%c1_9] : memref<4xf32, #tpu.memory_space<smem>>
    %c2 = arith.constant 2 : index
    %18 = memref.load %arg1[%c2] : memref<4xf32, #tpu.memory_space<smem>>
    %c3 = arith.constant 3 : index
    %19 = memref.load %arg1[%c3] : memref<4xf32, #tpu.memory_space<smem>>
    %c0_10 = arith.constant 0 : index
    %c0_11 = arith.constant 0 : index
    %20 = vector.load %arg3[%c0_10, %c0_11] : memref<24x8xf32, #tpu.memory_space<vmem>>, vector<24x1xf32>
    %c0_12 = arith.constant 0 : index
    %c1_13 = arith.constant 1 : index
    %21 = vector.load %arg3[%c0_12, %c1_13] : memref<24x8xf32, #tpu.memory_space<vmem>>, vector<24x1xf32>
    %22 = vector.extract_strided_slice %14 {offsets = [0, 0], sizes = [24, 1], strides = [1, 1]} : vector<24x4xf32> to vector<24x1xf32>
    %23 = vector.extract_strided_slice %15 {offsets = [0, 2], sizes = [24, 1], strides = [1, 1]} : vector<24x4xf32> to vector<24x1xf32>
    %24 = arith.addf %22, %23 : vector<24x1xf32>
    %25 = vector.broadcast %16 : f32 to vector<24x1xf32>
    %26 = arith.addf %24, %25 : vector<24x1xf32>
    %27 = arith.mulf %20, %26 : vector<24x1xf32>
    %28 = vector.extract_strided_slice %14 {offsets = [0, 1], sizes = [24, 1], strides = [1, 1]} : vector<24x4xf32> to vector<24x1xf32>
    %29 = vector.extract_strided_slice %15 {offsets = [0, 3], sizes = [24, 1], strides = [1, 1]} : vector<24x4xf32> to vector<24x1xf32>
    %30 = arith.addf %28, %29 : vector<24x1xf32>
    %31 = vector.broadcast %17 : f32 to vector<24x1xf32>
    %32 = arith.addf %30, %31 : vector<24x1xf32>
    %33 = arith.mulf %21, %32 : vector<24x1xf32>
    %34 = arith.addf %27, %33 : vector<24x1xf32>
    %35 = vector.broadcast %18 : f32 to vector<24x1xf32>
    %36 = arith.mulf %20, %35 : vector<24x1xf32>
    %37 = vector.broadcast %19 : f32 to vector<24x1xf32>
    %38 = arith.mulf %21, %37 : vector<24x1xf32>
    %39 = arith.addf %36, %38 : vector<24x1xf32>
    %40 = tpu.reciprocal %39 {approx = true} : vector<24x1xf32> -> vector<24x1xf32>
    %41 = arith.mulf %34, %40 : vector<24x1xf32>
    %cst_14 = arith.constant 0.000000e+00 : f32
    %42 = vector.broadcast %cst_14 : f32 to vector<24x1xf32>
    %43 = arith.maximumf %41, %42 : vector<24x1xf32>
    %44 = math.absf %41 : vector<24x1xf32>
    %cst_15 = arith.constant 0.000000e+00 : f32
    %45 = vector.broadcast %cst_15 : f32 to vector<24x1xf32>
    %46 = arith.subf %45, %44 : vector<24x1xf32>
    %47 = math.exp %46 : vector<24x1xf32>
    %cst_16 = arith.constant 1.000000e+00 : f32
    %48 = vector.broadcast %cst_16 : f32 to vector<24x1xf32>
    %49 = arith.addf %48, %47 : vector<24x1xf32>
    %50 = math.log %49 : vector<24x1xf32>
    %51 = arith.addf %43, %50 : vector<24x1xf32>
    %52 = arith.mulf %39, %51 : vector<24x1xf32>
    %c0_17 = arith.constant 0 : index
    %c3_18 = arith.constant 3 : index
    %53 = vector.load %arg3[%c0_17, %c3_18] : memref<24x8xf32, #tpu.memory_space<vmem>>, vector<24x1xf32>
    %54 = arith.mulf %52, %53 : vector<24x1xf32>
    %55 = vector.shape_cast %54 : vector<24x1xf32> to vector<1x24x1xf32>
    %cst_19 = arith.constant dense<0.000000e+00> : vector<1xf32>
    %56 = vector.multi_reduction <add>, %55, %cst_19 [1, 2] : vector<1x24x1xf32> to vector<1xf32>
    %57 = vector.shape_cast %56 : vector<1xf32> to vector<1x1x1xf32>
    %58 = vector.extract %57[0, 0, 0] : f32 from vector<1x1x1xf32>
    %c0_20 = arith.constant 0 : index
    %c2_21 = arith.constant 2 : index
    %59 = vector.load %arg3[%c0_20, %c2_21] : memref<24x8xf32, #tpu.memory_space<vmem>>, vector<24x1xf32>
    %60 = arith.mulf %52, %59 : vector<24x1xf32>
    %61 = vector.shape_cast %60 : vector<24x1xf32> to vector<1x24x1xf32>
    %cst_22 = arith.constant dense<0.000000e+00> : vector<1xf32>
    %62 = vector.multi_reduction <add>, %61, %cst_22 [1, 2] : vector<1x24x1xf32> to vector<1xf32>
    %63 = vector.shape_cast %62 : vector<1xf32> to vector<1x1x1xf32>
    %64 = vector.extract %63[0, 0, 0] : f32 from vector<1x1x1xf32>
    %c0_23 = arith.constant 0 : index
    %65 = memref.load %arg0[%c0_23] : memref<2xi32, #tpu.memory_space<smem>>
    %c1_24 = arith.constant 1 : index
    %66 = memref.load %arg0[%c1_24] : memref<2xi32, #tpu.memory_space<smem>>
    %67 = arith.index_cast %65 : i32 to index
    %c0_25 = arith.constant 0 : index
    %68 = vector.load %arg5[%67, %c0_25] : memref<32x32xf32, #tpu.memory_space<vmem>>, vector<1x32xf32>
    %69 = arith.index_cast %66 : i32 to index
    %c0_26 = arith.constant 0 : index
    %70 = vector.load %arg5[%69, %c0_26] : memref<32x32xf32, #tpu.memory_space<vmem>>, vector<1x32xf32>
    %71 = tpu.concatenate %68, %70 in 0 : vector<1x32xf32>, vector<1x32xf32> -> vector<2x32xf32>
    %72 = arith.index_cast %65 : i32 to index
    %c0_27 = arith.constant 0 : index
    %73 = vector.load %arg6[%72, %c0_27] : memref<32x32xf32, #tpu.memory_space<vmem>>, vector<1x32xf32>
    %74 = arith.index_cast %66 : i32 to index
    %c0_28 = arith.constant 0 : index
    %75 = vector.load %arg6[%74, %c0_28] : memref<32x32xf32, #tpu.memory_space<vmem>>, vector<1x32xf32>
    %76 = tpu.concatenate %73, %75 in 0 : vector<1x32xf32>, vector<1x32xf32> -> vector<2x32xf32>
    %cst_29 = arith.constant 0.000000e+00 : f32
    %77 = vector.broadcast %cst_29 : f32 to vector<2x32xf32>
    %78 = arith.cmpf ogt, %76, %77 : vector<2x32xf32>
    %79 = arith.extui %78 : vector<2x32xi1> to vector<2x32xi32>
    %80 = arith.sitofp %79 : vector<2x32xi32> to vector<2x32xf32>
    %cst_30 = arith.constant 0.000000e+00 : f32
    %81 = vector.broadcast %cst_30 : f32 to vector<2x32xf32>
    %82 = arith.cmpf ogt, %80, %81 : vector<2x32xf32>
    %cst_31 = arith.constant -1.000000e+30 : f32
    %83 = vector.broadcast %cst_31 : f32 to vector<2x32xf32>
    %84 = arith.select %82, %71, %83 : vector<2x32xi1>, vector<2x32xf32>
    %cst_32 = arith.constant dense<0xFF800000> : vector<2xf32>
    %85 = vector.multi_reduction <maximumf>, %84, %cst_32 [1] : vector<2x32xf32> to vector<2xf32>
    %86 = vector.shape_cast %85 : vector<2xf32> to vector<2x1xf32>
    %87 = vector.broadcast %86 : vector<2x1xf32> to vector<2x32xf32>
    %88 = arith.subf %71, %87 : vector<2x32xf32>
    %cst_33 = arith.constant 0.000000e+00 : f32
    %89 = vector.broadcast %cst_33 : f32 to vector<2x32xf32>
    %90 = arith.minimumf %88, %89 : vector<2x32xf32>
    %91 = math.exp %90 : vector<2x32xf32>
    %92 = arith.mulf %91, %80 : vector<2x32xf32>
    %cst_34 = arith.constant dense<0.000000e+00> : vector<2xf32>
    %93 = vector.multi_reduction <add>, %92, %cst_34 [1] : vector<2x32xf32> to vector<2xf32>
    %94 = vector.shape_cast %93 : vector<2xf32> to vector<2x1xf32>
    %cst_35 = arith.constant 9.99999968E-21 : f32
    %95 = vector.broadcast %cst_35 : f32 to vector<2x1xf32>
    %96 = arith.maximumf %94, %95 : vector<2x1xf32>
    %97 = tpu.reciprocal %96 {approx = true} : vector<2x1xf32> -> vector<2x1xf32>
    %98 = vector.broadcast %97 : vector<2x1xf32> to vector<2x32xf32>
    %99 = arith.mulf %92, %98 : vector<2x32xf32>
    %100 = tpu.concatenate %99, %80 in 0 : vector<2x32xf32>, vector<2x32xf32> -> vector<4x32xf32>
    %101 = tpu.transpose %100, [1, 0] : vector<4x32xf32> -> vector<32x4xf32>
    %c0_36 = arith.constant 0 : index
    %c0_37 = arith.constant 0 : index
    %102 = vector.load %arg7[%c0_36, %c0_37] : memref<96x32xf32, #tpu.memory_space<vmem>>, vector<32x32xf32>
    %cst_38 = arith.constant dense<0.000000e+00> : vector<32x32xf32>
    %103 = tpu.matmul %0, %102, %cst_38 {dimension_numbers = #tpu.dot_dimension_numbers<[1], [0], [0], [1], [0, 0, 1, 1], [], []>} : vector<32x32xf32>, vector<32x32xf32>, vector<32x32xf32> -> vector<32x32xf32>
    %c0_39 = arith.constant 0 : index
    %c0_40 = arith.constant 0 : index
    %104 = vector.load %arg9[%c0_39, %c0_40] : memref<3x32xf32, #tpu.memory_space<vmem>>, vector<1x32xf32>
    %105 = vector.broadcast %104 : vector<1x32xf32> to vector<32x32xf32>
    %106 = arith.addf %103, %105 : vector<32x32xf32>
    %107 = arith.index_cast %65 : i32 to index
    %c0_41 = arith.constant 0 : index
    %108 = vector.load %arg4[%107, %c0_41] : memref<32x32xf32, #tpu.memory_space<vmem>>, vector<1x32xf32>
    %109 = arith.index_cast %66 : i32 to index
    %c0_42 = arith.constant 0 : index
    %110 = vector.load %arg4[%109, %c0_42] : memref<32x32xf32, #tpu.memory_space<vmem>>, vector<1x32xf32>
    %111 = vector.extract_strided_slice %80 {offsets = [0, 0], sizes = [1, 32], strides = [1, 1]} : vector<2x32xf32> to vector<1x32xf32>
    %112 = vector.shape_cast %111 : vector<1x32xf32> to vector<1x1x32xf32>
    %cst_43 = arith.constant dense<0.000000e+00> : vector<1xf32>
    %113 = vector.multi_reduction <add>, %112, %cst_43 [1, 2] : vector<1x1x32xf32> to vector<1xf32>
    %114 = vector.shape_cast %113 : vector<1xf32> to vector<1x1x1xf32>
    %115 = vector.extract %114[0, 0, 0] : f32 from vector<1x1x1xf32>
    %cst_44 = arith.constant 0.000000e+00 : f32
    %116 = arith.cmpf ogt, %115, %cst_44 : f32
    %117 = vector.extract_strided_slice %80 {offsets = [1, 0], sizes = [1, 32], strides = [1, 1]} : vector<2x32xf32> to vector<1x32xf32>
    %118 = vector.shape_cast %117 : vector<1x32xf32> to vector<1x1x32xf32>
    %cst_45 = arith.constant dense<0.000000e+00> : vector<1xf32>
    %119 = vector.multi_reduction <add>, %118, %cst_45 [1, 2] : vector<1x1x32xf32> to vector<1xf32>
    %120 = vector.shape_cast %119 : vector<1xf32> to vector<1x1x1xf32>
    %121 = vector.extract %120[0, 0, 0] : f32 from vector<1x1x1xf32>
    %cst_46 = arith.constant 0.000000e+00 : f32
    %122 = arith.cmpf ogt, %121, %cst_46 : f32
    %123 = vector.extract_strided_slice %101 {offsets = [0, 0], sizes = [32, 1], strides = [1, 1]} : vector<32x4xf32> to vector<32x1xf32>
    %124 = vector.broadcast %123 : vector<32x1xf32> to vector<32x32xf32>
    %125 = arith.mulf %124, %106 : vector<32x32xf32>
    %126 = arith.negf %125 : vector<32x32xf32>
    %127 = math.exp %126 : vector<32x32xf32>
    %cst_47 = arith.constant 1.000000e+00 : f32
    %128 = vector.broadcast %cst_47 : f32 to vector<32x32xf32>
    %129 = arith.addf %128, %127 : vector<32x32xf32>
    %130 = arith.divf %128, %129 : vector<32x32xf32>
    %131 = vector.extract_strided_slice %101 {offsets = [0, 2], sizes = [32, 1], strides = [1, 1]} : vector<32x4xf32> to vector<32x1xf32>
    %cst_48 = arith.constant 0.000000e+00 : f32
    %132 = vector.broadcast %cst_48 : f32 to vector<32x1xf32>
    %133 = arith.cmpf ogt, %131, %132 : vector<32x1xf32>
    %cst_49 = arith.constant -1.000000e+30 : f32
    %134 = vector.shape_cast %133 : vector<32x1xi1> to vector<32x1xi1>
    %135 = vector.broadcast %134 : vector<32x1xi1> to vector<32x32xi1>
    %136 = vector.broadcast %cst_49 : f32 to vector<32x32xf32>
    %137 = arith.select %135, %130, %136 : vector<32x32xi1>, vector<32x32xf32>
    %cst_50 = arith.constant dense<0xFF800000> : vector<32xf32>
    %138 = vector.multi_reduction <maximumf>, %137, %cst_50 [0] : vector<32x32xf32> to vector<32xf32>
    %139 = vector.shape_cast %138 : vector<32xf32> to vector<1x32xf32>
    %140 = arith.select %116, %139, %108 : vector<1x32xf32>
    %141 = vector.extract_strided_slice %101 {offsets = [0, 1], sizes = [32, 1], strides = [1, 1]} : vector<32x4xf32> to vector<32x1xf32>
    %142 = vector.broadcast %141 : vector<32x1xf32> to vector<32x32xf32>
    %143 = arith.mulf %142, %106 : vector<32x32xf32>
    %144 = arith.negf %143 : vector<32x32xf32>
    %145 = math.exp %144 : vector<32x32xf32>
    %cst_51 = arith.constant 1.000000e+00 : f32
    %146 = vector.broadcast %cst_51 : f32 to vector<32x32xf32>
    %147 = arith.addf %146, %145 : vector<32x32xf32>
    %148 = arith.divf %146, %147 : vector<32x32xf32>
    %149 = vector.extract_strided_slice %101 {offsets = [0, 3], sizes = [32, 1], strides = [1, 1]} : vector<32x4xf32> to vector<32x1xf32>
    %cst_52 = arith.constant 0.000000e+00 : f32
    %150 = vector.broadcast %cst_52 : f32 to vector<32x1xf32>
    %151 = arith.cmpf ogt, %149, %150 : vector<32x1xf32>
    %cst_53 = arith.constant -1.000000e+30 : f32
    %152 = vector.shape_cast %151 : vector<32x1xi1> to vector<32x1xi1>
    %153 = vector.broadcast %152 : vector<32x1xi1> to vector<32x32xi1>
    %154 = vector.broadcast %cst_53 : f32 to vector<32x32xf32>
    %155 = arith.select %153, %148, %154 : vector<32x32xi1>, vector<32x32xf32>
    %cst_54 = arith.constant dense<0xFF800000> : vector<32xf32>
    %156 = vector.multi_reduction <maximumf>, %155, %cst_54 [0] : vector<32x32xf32> to vector<32xf32>
    %157 = vector.shape_cast %156 : vector<32xf32> to vector<1x32xf32>
    %158 = arith.select %122, %157, %110 : vector<1x32xf32>
    %159 = tpu.concatenate %158, %140 in 0 : vector<1x32xf32>, vector<1x32xf32> -> vector<2x32xf32>
    %160 = tpu.concatenate %108, %110 in 0 : vector<1x32xf32>, vector<1x32xf32> -> vector<2x32xf32>
    %161 = tpu.concatenate %159, %160 in 1 : vector<2x32xf32>, vector<2x32xf32> -> vector<2x64xf32>
    %c2_55 = arith.constant 2 : index
    %c0_56 = arith.constant 0 : index
    %162 = vector.load %arg9[%c2_55, %c0_56] : memref<3x32xf32, #tpu.memory_space<vmem>>, vector<1x32xf32>
    %c0_57 = arith.constant 0 : index
    %c4 = arith.constant 4 : index
    %163 = vector.load %arg3[%c0_57, %c4] : memref<24x8xf32, #tpu.memory_space<vmem>>, vector<1x2xf32>
    %164 = vector.extract_strided_slice %163 {offsets = [0, 0], sizes = [1, 1], strides = [1, 1]} : vector<1x2xf32> to vector<1x1xf32>
    %165 = vector.broadcast %164 : vector<1x1xf32> to vector<1x32xf32>
    %166 = arith.mulf %165, %162 : vector<1x32xf32>
    %167 = vector.extract_strided_slice %163 {offsets = [0, 1], sizes = [1, 1], strides = [1, 1]} : vector<1x2xf32> to vector<1x1xf32>
    %168 = vector.broadcast %167 : vector<1x1xf32> to vector<1x32xf32>
    %169 = arith.mulf %168, %162 : vector<1x32xf32>
    %170 = tpu.concatenate %166, %169 in 0 : vector<1x32xf32>, vector<1x32xf32> -> vector<2x32xf32>
    %c32 = arith.constant 32 : index
    %c0_58 = arith.constant 0 : index
    %171 = vector.load %arg7[%c32, %c0_58] : memref<96x32xf32, #tpu.memory_space<vmem>>, vector<64x32xf32>
    %cst_59 = arith.constant dense<0.000000e+00> : vector<2x32xf32>
    %172 = tpu.matmul %161, %171, %cst_59 {dimension_numbers = #tpu.dot_dimension_numbers<[1], [0], [0], [1], [0, 0, 1, 1], [], []>} : vector<2x64xf32>, vector<64x32xf32>, vector<2x32xf32> -> vector<2x32xf32>
    %c1_60 = arith.constant 1 : index
    %c0_61 = arith.constant 0 : index
    %173 = vector.load %arg9[%c1_60, %c0_61] : memref<3x32xf32, #tpu.memory_space<vmem>>, vector<1x32xf32>
    %174 = vector.broadcast %173 : vector<1x32xf32> to vector<2x32xf32>
    %175 = arith.addf %172, %174 : vector<2x32xf32>
    %176 = arith.addf %175, %170 : vector<2x32xf32>
    %177 = arith.negf %176 : vector<2x32xf32>
    %178 = math.exp %177 : vector<2x32xf32>
    %cst_62 = arith.constant 1.000000e+00 : f32
    %179 = vector.broadcast %cst_62 : f32 to vector<2x32xf32>
    %180 = arith.addf %179, %178 : vector<2x32xf32>
    %181 = arith.divf %179, %180 : vector<2x32xf32>
    %c0_63 = arith.constant 0 : index
    %c0_64 = arith.constant 0 : index
    %182 = vector.load %arg11[%c0_63, %c0_64] : memref<32x32xf32, #tpu.memory_space<vmem>>, vector<32x32xf32>
    tpu.vector_store %arg11[%c0_63, %c0_64], %0 {strides = array<i32>} : memref<32x32xf32, #tpu.memory_space<vmem>>, vector<32x32xf32>,
    %183 = vector.extract_strided_slice %181 {offsets = [0, 0], sizes = [1, 32], strides = [1, 1]} : vector<2x32xf32> to vector<1x32xf32>
    %184 = arith.index_cast %65 : i32 to index
    %c0_65 = arith.constant 0 : index
    %185 = vector.load %arg11[%184, %c0_65] : memref<32x32xf32, #tpu.memory_space<vmem>>, vector<1x32xf32>
    tpu.vector_store %arg11[%184, %c0_65], %183 {strides = array<i32>} : memref<32x32xf32, #tpu.memory_space<vmem>>, vector<1x32xf32>,
    %186 = vector.extract_strided_slice %181 {offsets = [1, 0], sizes = [1, 32], strides = [1, 1]} : vector<2x32xf32> to vector<1x32xf32>
    %187 = arith.index_cast %66 : i32 to index
    %c0_66 = arith.constant 0 : index
    %188 = vector.load %arg11[%187, %c0_66] : memref<32x32xf32, #tpu.memory_space<vmem>>, vector<1x32xf32>
    tpu.vector_store %arg11[%187, %c0_66], %186 {strides = array<i32>} : memref<32x32xf32, #tpu.memory_space<vmem>>, vector<1x32xf32>,
    %189 = tpu.iota {dimensions = array<i32: 1>} : vector<1x128xi32>
    %c0_i32 = arith.constant 0 : i32
    %190 = vector.broadcast %c0_i32 : i32 to vector<1x128xi32>
    %191 = arith.cmpi eq, %189, %190 : vector<1x128xi32>
    %c1_i32 = arith.constant 1 : i32
    %192 = vector.broadcast %c1_i32 : i32 to vector<1x128xi32>
    %193 = arith.cmpi eq, %189, %192 : vector<1x128xi32>
    %cst_67 = arith.constant 0.000000e+00 : f32
    %194 = vector.broadcast %64 : f32 to vector<1x128xf32>
    %195 = vector.broadcast %cst_67 : f32 to vector<1x128xf32>
    %196 = arith.select %193, %194, %195 : vector<1x128xi1>, vector<1x128xf32>
    %197 = vector.broadcast %58 : f32 to vector<1x128xf32>
    %198 = arith.select %191, %197, %196 : vector<1x128xi1>, vector<1x128xf32>
    %c0_68 = arith.constant 0 : index
    %c0_69 = arith.constant 0 : index
    %199 = vector.load %arg10[%c0_68, %c0_69] : memref<1x128xf32, #tpu.memory_space<vmem>>, vector<1x128xf32>
    tpu.vector_store %arg10[%c0_68, %c0_69], %198 {strides = array<i32>} : memref<1x128xf32, #tpu.memory_space<vmem>>, vector<1x128xf32>,
    return
  }
}

</mosaic_0001>

<llo_original>
// kernel: tpu_custom_call.1
$region0: #{tpu_custom_call.1}
  #allocation0 [shape = 'u32[]', space=smem, size = 0x4, offset = 0x4, fixed_abs, tag = 'smem constant byte address 0x4 - core index']
  #allocation1 [shape = 'u32[144,128]{1,0:T(1,128)}', space=vmem, size = 0x12000, scoped, tag = 'internal scratch']
  %s0 = inlined_call_operand.vmem [shape: s32[2], index: 0, kind: input, shape index: {}]
  %s1 = inlined_call_operand.vmem [shape: f32[4], index: 1, kind: input, shape index: {}]
  %s2 = inlined_call_operand.vmem [shape: s32[24,2], index: 2, kind: input, shape index: {}]
  %s3 = inlined_call_operand.vmem [shape: f32[24,8], index: 3, kind: input, shape index: {}]
  %s4 = inlined_call_operand.hbm [shape: f32[32,32], index: 4, kind: input, shape index: {}, may-alias: {4,11}]
  %s5 = inlined_call_operand.vmem [shape: f32[32,32], index: 5, kind: input, shape index: {}]
  %s6 = inlined_call_operand.vmem [shape: f32[32,32], index: 6, kind: input, shape index: {}]
  %s7 = inlined_call_operand.vmem [shape: f32[96,32], index: 7, kind: input, shape index: {}]
  %s8 = inlined_call_operand.vmem [shape: f32[32,4], index: 8, kind: input, shape index: {}]
  %s9 = inlined_call_operand.vmem [shape: f32[3,32], index: 9, kind: input, shape index: {}]
  %s10 = inlined_call_operand.hbm [shape: f32[1,128], index: 10, kind: output, shape index: {0}]
  %s11 = inlined_call_operand.hbm [shape: f32[32,32], index: 11, kind: output, shape index: {1}, may-alias: {4,11}]
  %12 = xla_tuple %s10, %s11
  %s13 = sld [smem:[#allocation0]]
  $region70: #{tpu_custom_call.1} parent=0
    _
  %s15 = ssub.s32 1, %s13
  %s16 = scalar_select 0, %s15, %s13
  $region1: #{tpu_custom_call.1} parent=0
    #allocation2 [shape = 'u8[512]{0}', space=smem, size = 0x200, scoped, tag = 'input window, operand 0, single buffered']
    #allocation3 [shape = 's32[1]{0}', space=sflag, size = 0x4, scoped, tag = 'scoped memory for tpu_custom_call.1']
    #allocation4 [shape = 's32[1]{0}', space=sflag, size = 0x4, scoped, tag = 'scoped memory for tpu_custom_call.1']
    #allocation5 [shape = 's32[1]{0}', space=sflag, size = 0x4, scoped, tag = 'scoped memory for tpu_custom_call.1']
    #allocation6 [shape = 'u8[512]{0}', space=smem, size = 0x200, scoped, tag = 'input window, operand 1, single buffered']
    #allocation7 [shape = 's32[1]{0}', space=sflag, size = 0x4, scoped, tag = 'scoped memory for tpu_custom_call.1']
    #allocation8 [shape = 'u8[16384]{0}', space=vmem, size = 0x4000, scoped, tag = 'input window, operand 4, single buffered']
    #allocation9 [shape = 'u8[512]{0}', space=vmem, size = 0x400, scoped, tag = 'output window, operand 0, single buffered']
    #allocation10 [shape = 'u8[16384]{0}', space=vmem, size = 0x4000, scoped, tag = 'output window, operand 1, single buffered']
    #allocation11 [shape = 's32[1]{0}', space=sflag, size = 0x4, scoped, tag = 'scoped memory for tpu_custom_call.1']
    %17 = vsyncpa [#allocation5], 0
    %18 = vsyncpa [#allocation7], 0
    %19 = vsyncpa [#allocation3], 0
    %20 = vsyncpa [#allocation4], 0
    %21 = vsyncpa [#allocation11], 0
    // Predicated region
    $region2: #{tpu_custom_call.1} parent=1 // pred_check
      _
    $region3: #{tpu_custom_call.1} parent=1 // pred_check_branch
      %23 = sbr.rel (0) target = $region5
    $region4: #{tpu_custom_call.1} parent=1 // pred_region
      %s25 = ssub.s32 16, 16
      %26 = vsyncadd [#allocation5], %s25
      %s28 = sshll.u32 %s0, 4
      %s29 = int_to_ptr.vmem [resolvable:$true] %s28
      %31 = dma.vmem_to_smem %s29, 16, [#allocation2], [#allocation5]
    $region5: #{tpu_custom_call.1} parent=1 // pred_fallthru
      _
    // Predicated region
    $region6: #{tpu_custom_call.1} parent=1 // pred_check
      _
    $region7: #{tpu_custom_call.1} parent=1 // pred_check_branch
      %33 = sbr.rel (0) target = $region9
    $region8: #{tpu_custom_call.1} parent=1 // pred_region
      %s35 = ssub.s32 16, 16
      %36 = vsyncadd [#allocation7], %s35
      %s38 = sshll.u32 %s1, 4
      %s39 = int_to_ptr.vmem [resolvable:$true] %s38
      %41 = dma.vmem_to_smem %s39, 16, [#allocation6], [#allocation7]
    $region9: #{tpu_custom_call.1} parent=1 // pred_fallthru
      _
    // Predicated region
    $region10: #{tpu_custom_call.1} parent=1 // pred_check
      _
    $region11: #{tpu_custom_call.1} parent=1 // pred_check_branch
      %43 = sbr.rel (0) target = $region13
    $region12: #{tpu_custom_call.1} parent=1 // pred_region
      _
    $region13: #{tpu_custom_call.1} parent=1 // pred_fallthru
      _
    // Predicated region
    $region14: #{tpu_custom_call.1} parent=1 // pred_check
      _
    $region15: #{tpu_custom_call.1} parent=1 // pred_check_branch
      %45 = sbr.rel (0) target = $region17
    $region16: #{tpu_custom_call.1} parent=1 // pred_region
      _
    $region17: #{tpu_custom_call.1} parent=1 // pred_fallthru
      _
    // Predicated region
    $region18: #{tpu_custom_call.1} parent=1 // pred_check
      _
    $region19: #{tpu_custom_call.1} parent=1 // pred_check_branch
      %47 = sbr.rel (0) target = $region21
    $region20: #{tpu_custom_call.1} parent=1 // pred_region
      %s49 = ssub.s32 512, 512
      %50 = vsyncadd [#allocation3], %s49
      %s51 = sshll.u32 [#allocation8], 4
      %s52 = int_to_ptr.vmem [resolvable:$true] %s51
      %57 = dma.hbm_to_vmem [thread:$0]  %s4, 512, %s52, [#allocation3], 128, 128, 8
    $region21: #{tpu_custom_call.1} parent=1 // pred_fallthru
      _
    // Predicated region
    $region22: #{tpu_custom_call.1} parent=1 // pred_check
      _
    $region23: #{tpu_custom_call.1} parent=1 // pred_check_branch
      %59 = sbr.rel (0) target = $region25
    $region24: #{tpu_custom_call.1} parent=1 // pred_region
      _
    $region25: #{tpu_custom_call.1} parent=1 // pred_fallthru
      _
    // Predicated region
    $region26: #{tpu_custom_call.1} parent=1 // pred_check
      _
    $region27: #{tpu_custom_call.1} parent=1 // pred_check_branch
      %61 = sbr.rel (0) target = $region29
    $region28: #{tpu_custom_call.1} parent=1 // pred_region
      _
    $region29: #{tpu_custom_call.1} parent=1 // pred_fallthru
      _
    // Predicated region
    $region30: #{tpu_custom_call.1} parent=1 // pred_check
      _
    $region31: #{tpu_custom_call.1} parent=1 // pred_check_branch
      %63 = sbr.rel (0) target = $region33
    $region32: #{tpu_custom_call.1} parent=1 // pred_region
      _
    $region33: #{tpu_custom_call.1} parent=1 // pred_fallthru
      _
    // Predicated region
    $region34: #{tpu_custom_call.1} parent=1 // pred_check
      _
    $region35: #{tpu_custom_call.1} parent=1 // pred_check_branch
      %65 = sbr.rel (0) target = $region37
    $region36: #{tpu_custom_call.1} parent=1 // pred_region
      _
    $region37: #{tpu_custom_call.1} parent=1 // pred_fallthru
      _
    // Predicated region
    $region38: #{tpu_custom_call.1} parent=1 // pred_check
      _
    $region39: #{tpu_custom_call.1} parent=1 // pred_check_branch
      %67 = sbr.rel (0) target = $region41
    $region40: #{tpu_custom_call.1} parent=1 // pred_region
      _
    $region41: #{tpu_custom_call.1} parent=1 // pred_fallthru
      _
    // Predicated region
    $region42: #{tpu_custom_call.1} parent=1 // pred_check
      _
    $region43: #{tpu_custom_call.1} parent=1 // pred_check_branch
      %69 = sbr.rel (0) target = $region45
    $region44: #{tpu_custom_call.1} parent=1 // pred_region
      %70 = dma.done [#allocation5], 16
    $region45: #{tpu_custom_call.1} parent=1 // pred_fallthru
      _
    // Predicated region
    $region46: #{tpu_custom_call.1} parent=1 // pred_check
      _
    $region47: #{tpu_custom_call.1} parent=1 // pred_check_branch
      %72 = sbr.rel (0) target = $region49
    $region48: #{tpu_custom_call.1} parent=1 // pred_region
      %73 = dma.done [#allocation7], 16
    $region49: #{tpu_custom_call.1} parent=1 // pred_fallthru
      _
    // Predicated region
    $region50: #{tpu_custom_call.1} parent=1 // pred_check
      _
    $region51: #{tpu_custom_call.1} parent=1 // pred_check_branch
      %75 = sbr.rel (0) target = $region53
    $region52: #{tpu_custom_call.1} parent=1 // pred_region
      %76 = dma.done [#allocation3], 512
    $region53: #{tpu_custom_call.1} parent=1 // pred_fallthru
      _
    %77 = sfence
    %v78 = vld [vmem:[#allocation8] sm:$0xff]
    %v79 = vld [vmem:[#allocation8 + $0x8] sm:$0xff]
    %v80 = vld [vmem:[#allocation8 + $0x10] sm:$0xff]
    %v81 = vld [vmem:[#allocation8 + $0x18] sm:$0xff]
    %v82 = vld [vmem:[%s8] sm:$0xff]
    %v83 = vld [vmem:[%s8 + $0x8] sm:$0xff]
    %v84 = vld [vmem:[%s8 + $0x10] sm:$0xff]
    %v85 = vld [vmem:[%s8 + $0x18] sm:$0xff]
    %vm86 = vcmask 261120
    %v88 = vsel %vm86, %v78, 0
    %v91 = vsel %vm86, %v79, 0
    %v94 = vsel %vm86, %v80, 0
    %v97 = vsel %vm86, %v81, 0
    %99 = vmatprep.subr.mxu0 0.0
    %100 = vmatpush1.msra.mxu0 %v82
    %101 = vmatprep.subr.mxu0 0.0
    %102 = vmatpush1.msra.mxu0 %v83
    %103 = vmatprep.subr.mxu0 0.0
    %104 = vmatpush1.msra.mxu0 %v84
    %105 = vmatprep.subr.mxu0 0.0
    %106 = vmatpush1.msra.mxu0 %v85
    %107 = vmatprep.subr.mxu0 0.0
    %108 = vmatpush1.msra.mxu0 0.0
    %109 = vmatprep.subr.mxu0 0.0
    %110 = vmatpush1.msra.mxu0 0.0
    %111 = vmatprep.subr.mxu0 0.0
    %112 = vmatpush1.msra.mxu0 0.0
    %113 = vmatprep.subr.mxu0 0.0
    %114 = vmatpush1.msra.mxu0 0.0
    %115 = vmatprep.subr.mxu0 0.0
    %116 = vmatpush1.msra.mxu0 0.0
    %117 = vmatprep.subr.mxu0 0.0
    %118 = vmatpush1.msra.mxu0 0.0
    %119 = vmatprep.subr.mxu0 0.0
    %120 = vmatpush1.msra.mxu0 0.0
    %121 = vmatprep.subr.mxu0 0.0
    %122 = vmatpush1.msra.mxu0 0.0
    %123 = vmatprep.subr.mxu0 0.0
    %124 = vmatpush1.msra.mxu0 0.0
    %125 = vmatprep.subr.mxu0 0.0
    %126 = vmatpush1.msra.mxu0 0.0
    %127 = vmatprep.subr.mxu0 0.0
    %128 = vmatpush1.msra.mxu0 0.0
    %129 = vmatprep.subr.mxu0 0.0
    %130 = vmatpush1.msra.mxu0 0.0
    %131 = vmatprep.subr.mxu0 0.0
    %132 = vmatpush1.msra.mxu0 0.0
    %133 = vmatprep.subr.mxu0 0.0
    %134 = vmatpush1.msra.mxu0 0.0
    %135 = vmatprep.subr.mxu0 0.0
    %136 = vmatpush1.msra.mxu0 0.0
    %137 = vmatprep.subr.mxu0 0.0
    %138 = vmatpush1.msra.mxu0 0.0
    %139 = vmatprep.subr.mxu0 0.0
    %140 = vmatpush1.msra.mxu0 0.0
    %141 = vmatprep.subr.mxu0 0.0
    %142 = vmatpush1.msra.mxu0 0.0
    %143 = vmatprep.subr.mxu0 0.0
    %144 = vmatpush1.msra.mxu0 0.0
    %145 = vmatprep.subr.mxu0 0.0
    %146 = vmatpush1.msra.mxu0 0.0
    %147 = vmatprep.subr.mxu0 0.0
    %148 = vmatpush1.msra.mxu0 0.0
    %149 = vmatprep.subr.mxu0 0.0
    %150 = vmatpush1.msra.mxu0 0.0
    %151 = vmatprep.subr.mxu0 0.0
    %152 = vmatpush1.msra.mxu0 0.0
    %153 = vmatprep.subr.mxu0 0.0
    %154 = vmatpush1.msra.mxu0 0.0
    %155 = vmatprep.subr.mxu0 0.0
    %156 = vmatpush1.msra.mxu0 0.0
    %157 = vmatprep.subr.mxu0 0.0
    %158 = vmatpush1.msra.mxu0 0.0
    %159 = vmatprep.subr.mxu0 0.0
    %160 = vmatpush1.msra.mxu0 0.0
    %161 = vmatprep.subr.mxu0 0.0
    %162 = vmatpush1.msra.mxu0 0.0
    %163 = vmatprep.mubr.f32.mxu0 0.0
    %164 = vmatmul.mubr.f32.gmra.mrb[0].mxu0 %v88
    %v165 = vpop.f32.mrb[0].mxu0
    %v166 = vadd.f32 0.0, %v165
    %v167 = vpop.f32.mrb[0].mxu0
    %168 = vmatprep.mubr.f32.mxu0 0.0
    %169 = vmatmul.mubr.f32.gmra.mrb[0].mxu0 %v91
    %v170 = vpop.f32.mrb[0].mxu0
    %v171 = vadd.f32 0.0, %v170
    %v172 = vpop.f32.mrb[0].mxu0
    %173 = vmatprep.mubr.f32.mxu0 0.0
    %174 = vmatmul.mubr.f32.gmra.mrb[0].mxu0 %v94
    %v175 = vpop.f32.mrb[0].mxu0
    %v176 = vadd.f32 0.0, %v175
    %v177 = vpop.f32.mrb[0].mxu0
    %178 = vmatprep.mubr.f32.mxu0 0.0
    %179 = vmatmul.mubr.f32.gmra.mrb[0].mxu0 %v97
    %v180 = vpop.f32.mrb[0].mxu0
    %v181 = vadd.f32 0.0, %v180
    %v182 = vpop.f32.mrb[0].mxu0
    %183 = vdwg.mxu0
    %v184 = vlaneseq
    %v185 = vand.u32 %v184, 127
    %v186 = vld [vmem:[%s2] sm:$0xff]
    %v187 = vld [vmem:[%s2 + $0x8] sm:$0xff]
    %v188 = vld [vmem:[%s2 + $0x10] sm:$0xff]
    %189 = vset.pattern.permute.xlu0 0
    %190 = vperm.xlu0 %189, %v186
    %v191 = vpop.permute.xlu0 %190
    %192 = vset.pattern.permute.xlu0 0
    %193 = vperm.xlu0 %192, %v187
    %v194 = vpop.permute.xlu0 %193
    %195 = vset.pattern.permute.xlu0 0
    %196 = vperm.xlu0 %195, %v188
    %v197 = vpop.permute.xlu0 %196
    %vm198 = vcmp.eq.s32.totalorder %v185, %v191
    %vm199 = vcmp.eq.s32.totalorder %v185, %v194
    %vm200 = vcmp.eq.s32.totalorder %v185, %v197
    %v201 = vsel %vm198, 1, 0
    %v202 = vsel %vm199, 1, 0
    %v203 = vsel %vm200, 1, 0
    %v204 = vcvt.s32.f32 %v201
    %v205 = vcvt.s32.f32 %v202
    %v206 = vcvt.s32.f32 %v203
    %207 = vset.pattern.permute.xlu0 1
    %208 = vperm.xlu0 %207, %v186
    %v209 = vpop.permute.xlu0 %208
    %210 = vset.pattern.permute.xlu0 1
    %211 = vperm.xlu0 %210, %v187
    %v212 = vpop.permute.xlu0 %211
    %213 = vset.pattern.permute.xlu0 1
    %214 = vperm.xlu0 %213, %v188
    %v215 = vpop.permute.xlu0 %214
    %vm216 = vcmp.eq.s32.totalorder %v185, %v209
    %vm217 = vcmp.eq.s32.totalorder %v185, %v212
    %vm218 = vcmp.eq.s32.totalorder %v185, %v215
    %v219 = vsel %vm216, 1, 0
    %v220 = vsel %vm217, 1, 0
    %v221 = vsel %vm218, 1, 0
    %v222 = vcvt.s32.f32 %v219
    %v223 = vcvt.s32.f32 %v220
    %v224 = vcvt.s32.f32 %v221
    %v226 = vsel %vm86, %v204, 0
    %v229 = vsel %vm86, %v205, 0
    %v232 = vsel %vm86, %v206, 0
    %234 = vmatprep.subr.mxu0 0.0
    %235 = vmatpush1.msra.mxu0 %v166
    %236 = vmatprep.subr.mxu0 0.0
    %237 = vmatpush1.msra.mxu0 %v171
    %238 = vmatprep.subr.mxu0 0.0
    %239 = vmatpush1.msra.mxu0 %v176
    %240 = vmatprep.subr.mxu0 0.0
    %241 = vmatpush1.msra.mxu0 %v181
    %242 = vmatprep.subr.mxu0 0.0
    %243 = vmatpush1.msra.mxu0 0.0
    %244 = vmatprep.subr.mxu0 0.0
    %245 = vmatpush1.msra.mxu0 0.0
    %246 = vmatprep.subr.mxu0 0.0
    %247 = vmatpush1.msra.mxu0 0.0
    %248 = vmatprep.subr.mxu0 0.0
    %249 = vmatpush1.msra.mxu0 0.0
    %250 = vmatprep.subr.mxu0 0.0
    %251 = vmatpush1.msra.mxu0 0.0
    %252 = vmatprep.subr.mxu0 0.0
    %253 = vmatpush1.msra.mxu0 0.0
    %254 = vmatprep.subr.mxu0 0.0
    %255 = vmatpush1.msra.mxu0 0.0
    %256 = vmatprep.subr.mxu0 0.0
    %257 = vmatpush1.msra.mxu0 0.0
    %258 = vmatprep.subr.mxu0 0.0
    %259 = vmatpush1.msra.mxu0 0.0
    %260 = vmatprep.subr.mxu0 0.0
    %261 = vmatpush1.msra.mxu0 0.0
    %262 = vmatprep.subr.mxu0 0.0
    %263 = vmatpush1.msra.mxu0 0.0
    %264 = vmatprep.subr.mxu0 0.0
    %265 = vmatpush1.msra.mxu0 0.0
    %266 = vmatprep.subr.mxu0 0.0
    %267 = vmatpush1.msra.mxu0 0.0
    %268 = vmatprep.subr.mxu0 0.0
    %269 = vmatpush1.msra.mxu0 0.0
    %270 = vmatprep.subr.mxu0 0.0
    %271 = vmatpush1.msra.mxu0 0.0
    %272 = vmatprep.subr.mxu0 0.0
    %273 = vmatpush1.msra.mxu0 0.0
    %274 = vmatprep.subr.mxu0 0.0
    %275 = vmatpush1.msra.mxu0 0.0
    %276 = vmatprep.subr.mxu0 0.0
    %277 = vmatpush1.msra.mxu0 0.0
    %278 = vmatprep.subr.mxu0 0.0
    %279 = vmatpush1.msra.mxu0 0.0
    %280 = vmatprep.subr.mxu0 0.0
    %281 = vmatpush1.msra.mxu0 0.0
    %282 = vmatprep.subr.mxu0 0.0
    %283 = vmatpush1.msra.mxu0 0.0
    %284 = vmatprep.subr.mxu0 0.0
    %285 = vmatpush1.msra.mxu0 0.0
    %286 = vmatprep.subr.mxu0 0.0
    %287 = vmatpush1.msra.mxu0 0.0
    %288 = vmatprep.subr.mxu0 0.0
    %289 = vmatpush1.msra.mxu0 0.0
    %290 = vmatprep.subr.mxu0 0.0
    %291 = vmatpush1.msra.mxu0 0.0
    %292 = vmatprep.subr.mxu0 0.0
    %293 = vmatpush1.msra.mxu0 0.0
    %294 = vmatprep.subr.mxu0 0.0
    %295 = vmatpush1.msra.mxu0 0.0
    %296 = vmatprep.subr.mxu0 0.0
    %297 = vmatpush1.msra.mxu0 0.0
    %298 = vmatprep.mubr.f32.mxu0 0.0
    %299 = vmatmul.mubr.f32.gmra.mrb[0].mxu0 %v226
    %v300 = vpop.f32.mrb[0].mxu0
    %v301 = vadd.f32 0.0, %v300
    %v302 = vpop.f32.mrb[0].mxu0
    %303 = vmatprep.mubr.f32.mxu0 0.0
    %304 = vmatmul.mubr.f32.gmra.mrb[0].mxu0 %v229
    %v305 = vpop.f32.mrb[0].mxu0
    %v306 = vadd.f32 0.0, %v305
    %v307 = vpop.f32.mrb[0].mxu0
    %308 = vmatprep.mubr.f32.mxu0 0.0
    %309 = vmatmul.mubr.f32.gmra.mrb[0].mxu0 %v232
    %v310 = vpop.f32.mrb[0].mxu0
    %v311 = vadd.f32 0.0, %v310
    %v312 = vpop.f32.mrb[0].mxu0
    %313 = vdwg.mxu0
    %v315 = vsel %vm86, %v222, 0
    %v318 = vsel %vm86, %v223, 0
    %v321 = vsel %vm86, %v224, 0
    %323 = vmatprep.subr.mxu0 0.0
    %324 = vmatpush1.msra.mxu0 %v166
    %325 = vmatprep.subr.mxu0 0.0
    %326 = vmatpush1.msra.mxu0 %v171
    %327 = vmatprep.subr.mxu0 0.0
    %328 = vmatpush1.msra.mxu0 %v176
    %329 = vmatprep.subr.mxu0 0.0
    %330 = vmatpush1.msra.mxu0 %v181
    %331 = vmatprep.subr.mxu0 0.0
    %332 = vmatpush1.msra.mxu0 0.0
    %333 = vmatprep.subr.mxu0 0.0
    %334 = vmatpush1.msra.mxu0 0.0
    %335 = vmatprep.subr.mxu0 0.0
    %336 = vmatpush1.msra.mxu0 0.0
    %337 = vmatprep.subr.mxu0 0.0
    %338 = vmatpush1.msra.mxu0 0.0
    %339 = vmatprep.subr.mxu0 0.0
    %340 = vmatpush1.msra.mxu0 0.0
    %341 = vmatprep.subr.mxu0 0.0
    %342 = vmatpush1.msra.mxu0 0.0
    %343 = vmatprep.subr.mxu0 0.0
    %344 = vmatpush1.msra.mxu0 0.0
    %345 = vmatprep.subr.mxu0 0.0
    %346 = vmatpush1.msra.mxu0 0.0
    %347 = vmatprep.subr.mxu0 0.0
    %348 = vmatpush1.msra.mxu0 0.0
    %349 = vmatprep.subr.mxu0 0.0
    %350 = vmatpush1.msra.mxu0 0.0
    %351 = vmatprep.subr.mxu0 0.0
    %352 = vmatpush1.msra.mxu0 0.0
    %353 = vmatprep.subr.mxu0 0.0
    %354 = vmatpush1.msra.mxu0 0.0
    %355 = vmatprep.subr.mxu0 0.0
    %356 = vmatpush1.msra.mxu0 0.0
    %357 = vmatprep.subr.mxu0 0.0
    %358 = vmatpush1.msra.mxu0 0.0
    %359 = vmatprep.subr.mxu0 0.0
    %360 = vmatpush1.msra.mxu0 0.0
    %361 = vmatprep.subr.mxu0 0.0
    %362 = vmatpush1.msra.mxu0 0.0
    %363 = vmatprep.subr.mxu0 0.0
    %364 = vmatpush1.msra.mxu0 0.0
    %365 = vmatprep.subr.mxu0 0.0
    %366 = vmatpush1.msra.mxu0 0.0
    %367 = vmatprep.subr.mxu0 0.0
    %368 = vmatpush1.msra.mxu0 0.0
    %369 = vmatprep.subr.mxu0 0.0
    %370 = vmatpush1.msra.mxu0 0.0
    %371 = vmatprep.subr.mxu0 0.0
    %372 = vmatpush1.msra.mxu0 0.0
    %373 = vmatprep.subr.mxu0 0.0
    %374 = vmatpush1.msra.mxu0 0.0
    %375 = vmatprep.subr.mxu0 0.0
    %376 = vmatpush1.msra.mxu0 0.0
    %377 = vmatprep.subr.mxu0 0.0
    %378 = vmatpush1.msra.mxu0 0.0
    %379 = vmatprep.subr.mxu0 0.0
    %380 = vmatpush1.msra.mxu0 0.0
    %381 = vmatprep.subr.mxu0 0.0
    %382 = vmatpush1.msra.mxu0 0.0
    %383 = vmatprep.subr.mxu0 0.0
    %384 = vmatpush1.msra.mxu0 0.0
    %385 = vmatprep.subr.mxu0 0.0
    %386 = vmatpush1.msra.mxu0 0.0
    %387 = vmatprep.mubr.f32.mxu0 0.0
    %388 = vmatmul.mubr.f32.gmra.mrb[0].mxu0 %v315
    %v389 = vpop.f32.mrb[0].mxu0
    %v390 = vadd.f32 0.0, %v389
    %v391 = vpop.f32.mrb[0].mxu0
    %392 = vmatprep.mubr.f32.mxu0 0.0
    %393 = vmatmul.mubr.f32.gmra.mrb[0].mxu0 %v318
    %v394 = vpop.f32.mrb[0].mxu0
    %v395 = vadd.f32 0.0, %v394
    %v396 = vpop.f32.mrb[0].mxu0
    %397 = vmatprep.mubr.f32.mxu0 0.0
    %398 = vmatmul.mubr.f32.gmra.mrb[0].mxu0 %v321
    %v399 = vpop.f32.mrb[0].mxu0
    %v400 = vadd.f32 0.0, %v399
    %v401 = vpop.f32.mrb[0].mxu0
    %402 = vdwg.mxu0
    %s403 = sld [smem:[#allocation6]]
    %s404 = sld [smem:[#allocation6 + $0x1]]
    %s405 = sld [smem:[#allocation6 + $0x2]]
    %s406 = sld [smem:[#allocation6 + $0x3]]
    %v407 = vld [vmem:[%s3] sm:$0xff]
    %v408 = vld [vmem:[%s3 + $0x8] sm:$0xff]
    %v409 = vld [vmem:[%s3 + $0x10] sm:$0xff]
    %413 = vrot.lane.b32.xlu0 %v390, 126
    %v414 = vpop.permute.xlu0 %413
    %415 = vrot.lane.b32.xlu0 %v395, 126
    %v416 = vpop.permute.xlu0 %415
    %417 = vrot.lane.b32.xlu0 %v400, 126
    %v418 = vpop.permute.xlu0 %417
    %v422 = vadd.f32 %v301, %v414
    %v423 = vadd.f32 %v306, %v416
    %v424 = vadd.f32 %v311, %v418
    %v425 = vstv %s403
    %v426 = vadd.f32 %v422, %v425
    %v427 = vadd.f32 %v423, %v425
    %v428 = vadd.f32 %v424, %v425
    %v429 = vmul.f32 %v407, %v426
    %v430 = vmul.f32 %v408, %v427
    %v431 = vmul.f32 %v409, %v428
    %v432 = vstv %s404
    %v433 = vadd.f32 %v422, %v432
    %v434 = vadd.f32 %v423, %v432
    %v435 = vadd.f32 %v424, %v432
    %v436 = vmul.f32 %v407, %v433
    %v437 = vmul.f32 %v408, %v434
    %v438 = vmul.f32 %v409, %v435
    %442 = vrot.lane.b32.xlu0 %v436, 127
    %v443 = vpop.permute.xlu0 %442
    %444 = vrot.lane.b32.xlu0 %v437, 127
    %v445 = vpop.permute.xlu0 %444
    %446 = vrot.lane.b32.xlu0 %v438, 127
    %v447 = vpop.permute.xlu0 %446
    %v451 = vadd.f32 %v429, %v443
    %v452 = vadd.f32 %v430, %v445
    %v453 = vadd.f32 %v431, %v447
    %v454 = vstv %s405
    %v455 = vmul.f32 %v407, %v454
    %v456 = vmul.f32 %v408, %v454
    %v457 = vmul.f32 %v409, %v454
    %v458 = vstv %s406
    %v459 = vmul.f32 %v407, %v458
    %v460 = vmul.f32 %v408, %v458
    %v461 = vmul.f32 %v409, %v458
    %465 = vrot.lane.b32.xlu0 %v459, 127
    %v466 = vpop.permute.xlu0 %465
    %467 = vrot.lane.b32.xlu0 %v460, 127
    %v468 = vpop.permute.xlu0 %467
    %469 = vrot.lane.b32.xlu0 %v461, 127
    %v470 = vpop.permute.xlu0 %469
    %v474 = vadd.f32 %v455, %v466
    %v475 = vadd.f32 %v456, %v468
    %v476 = vadd.f32 %v457, %v470
    %v477 = vrcp.pop %v474
    %v478 = vrcp.pop %v475
    %v479 = vrcp.pop %v476
    %v480 = vmul.f32 %v451, %v477
    %v481 = vmul.f32 %v452, %v478
    %v482 = vmul.f32 %v453, %v479
    %v483 = vmax.f32 %v480, 0.0
    %v484 = vmax.f32 %v481, 0.0
    %v485 = vmax.f32 %v482, 0.0
    %v486 = vand.u32 2147483647, %v480
    %v487 = vand.u32 2147483647, %v481
    %v488 = vand.u32 2147483647, %v482
    %v489 = vsub.f32 0.0, %v486
    %v490 = vsub.f32 0.0, %v487
    %v491 = vsub.f32 0.0, %v488
    %v492 = vmul.f32 %v489, 1.442695
    %v493 = vpow.pop %v492
    %v494 = vmul.f32 %v490, 1.442695
    %v495 = vpow.pop %v494
    %v496 = vmul.f32 %v491, 1.442695
    %v497 = vpow.pop %v496
    %v498 = vadd.f32 %v493, 1.0
    %v499 = vadd.f32 %v495, 1.0
    %v500 = vadd.f32 %v497, 1.0
    %v501 = vlog2.pop %v498
    %v502 = vmul.f32 %v501, 0.6931472
    %v503 = vlog2.pop %v499
    %v504 = vmul.f32 %v503, 0.6931472
    %v505 = vlog2.pop %v500
    %v506 = vmul.f32 %v505, 0.6931472
    %v507 = vadd.f32 %v483, %v502
    %v508 = vadd.f32 %v484, %v504
    %v509 = vadd.f32 %v485, %v506
    %v510 = vmul.f32 %v474, %v507
    %v511 = vmul.f32 %v475, %v508
    %v512 = vmul.f32 %v476, %v509
    %516 = vrot.lane.b32.xlu0 %v407, 125
    %v517 = vpop.permute.xlu0 %516
    %518 = vrot.lane.b32.xlu0 %v408, 125
    %v519 = vpop.permute.xlu0 %518
    %520 = vrot.lane.b32.xlu0 %v409, 125
    %v521 = vpop.permute.xlu0 %520
    %v525 = vmul.f32 %v510, %v517
    %v526 = vmul.f32 %v511, %v519
    %v527 = vmul.f32 %v512, %v521
    %vm528 = vcmask 7168
    %v529 = vsel %vm528, %v525, 0.0
    %v530 = vsel %vm528, %v526, 0.0
    %v531 = vadd.f32 %v529, %v530
    %v532 = vsel %vm528, %v527, 0.0
    %v533 = vadd.f32 %v531, %v532
    %534 = vadd.xlane.f32.xlu0 %v533
    %v535 = vpop.xlane.xlu0 %534
    %v536 = vrot.slane %v535, 4
    %v537 = vadd.f32 %v535, %v536
    %v538 = vrot.slane %v537, 2
    %v539 = vadd.f32 %v537, %v538
    %v540 = vrot.slane %v539, 1
    %v541 = vadd.f32 %v539, %v540
    %s542 = vtos %v541
    %543 = vrot.lane.b32.xlu0 %v407, 126
    %v544 = vpop.permute.xlu0 %543
    %545 = vrot.lane.b32.xlu0 %v408, 126
    %v546 = vpop.permute.xlu0 %545
    %547 = vrot.lane.b32.xlu0 %v409, 126
    %v548 = vpop.permute.xlu0 %547
    %v552 = vmul.f32 %v510, %v544
    %v553 = vmul.f32 %v511, %v546
    %v554 = vmul.f32 %v512, %v548
    %v555 = vsel %vm528, %v552, 0.0
    %v556 = vsel %vm528, %v553, 0.0
    %v557 = vadd.f32 %v555, %v556
    %v558 = vsel %vm528, %v554, 0.0
    %v559 = vadd.f32 %v557, %v558
    %560 = vadd.xlane.f32.xlu0 %v559
    %v561 = vpop.xlane.xlu0 %560
    %v562 = vrot.slane %v561, 4
    %v563 = vadd.f32 %v561, %v562
    %v564 = vrot.slane %v563, 2
    %v565 = vadd.f32 %v563, %v564
    %v566 = vrot.slane %v565, 1
    %v567 = vadd.f32 %v565, %v566
    %s568 = vtos %v567
    %s569 = sld [smem:[#allocation2]]
    %s570 = sld [smem:[#allocation2 + $0x1]]
    %s571 = scalar_lea.vmem %s5, %s569
    %v572 = vld [vmem:[%s571] sm:$0x1]
    %s573 = scalar_lea.vmem %s5, %s570
    %v574 = vld [vmem:[%s573] sm:$0x1]
    %v576 = vrot.slane %v574, 7
    %vm578 = vcmask 1040384
    %v579 = vsel %vm578, %v572, %v576
    %s580 = scalar_lea.vmem %s6, %s569
    %v581 = vld [vmem:[%s580] sm:$0x1]
    %s582 = scalar_lea.vmem %s6, %s570
    %v583 = vld [vmem:[%s582] sm:$0x1]
    %v585 = vrot.slane %v583, 7
    %v587 = vsel %vm578, %v581, %v585
    %vm588 = vcmp.gt.f32.partialorder %v587, 0.0
    %v589 = vsel %vm588, 1, 0
    %v590 = vcvt.s32.f32 %v589
    %vm591 = vcmp.gt.f32.partialorder %v590, 0.0
    %v592 = vsel %vm591, %v579, -1e+30
    %vm593 = vcmask 254976
    %v594 = vsel %vm593, %v592, -inf
    %595 = vmax.xlane.f32.xlu0 %v594
    %v596 = vpop.xlane.xlu0 %595
    %v597 = vsub.f32 %v579, %v596
    %v598 = vmin.f32 %v597, 0.0
    %v599 = vmul.f32 %v598, 1.442695
    %v600 = vpow.pop %v599
    %v601 = vmul.f32 %v600, %v590
    %v602 = vsel %vm593, %v601, 0.0
    %603 = vadd.xlane.f32.xlu0 %v602
    %v604 = vpop.xlane.xlu0 %603
    %v605 = vmax.f32 %v604, 1e-20
    %v606 = vrcp.pop %v605
    %v607 = vmul.f32 %v601, %v606
    %v609 = vrot.slane %v590, 6
    %vm611 = vcmask 1041408
    %v612 = vsel %vm611, %v607, %v609
    %613 = vxpose.xlu0.b32.start [1/16] %v612, 128
    %614 = vxpose.xlu0.b32.cont [2/16] 0.0, 128
    %615 = vxpose.xlu0.b32.cont [3/16] 0.0, 128
    %616 = vxpose.xlu0.b32.cont [4/16] 0.0, 128
    %617 = vxpose.xlu0.b32.cont [5/16] 0.0, 128
    %618 = vxpose.xlu0.b32.cont [6/16] 0.0, 128
    %619 = vxpose.xlu0.b32.cont [7/16] 0.0, 128
    %620 = vxpose.xlu0.b32.cont [8/16] 0.0, 128
    %621 = vxpose.xlu0.b32.cont [9/16] 0.0, 128
    %622 = vxpose.xlu0.b32.cont [10/16] 0.0, 128
    %623 = vxpose.xlu0.b32.cont [11/16] 0.0, 128
    %624 = vxpose.xlu0.b32.cont [12/16] 0.0, 128
    %625 = vxpose.xlu0.b32.cont [13/16] 0.0, 128
    %626 = vxpose.xlu0.b32.cont [14/16] 0.0, 128
    %627 = vxpose.xlu0.b32.cont [15/16] 0.0, 128
    %628 = vxpose.xlu0.b32.end [16/16] 0.0, 128
    %v629 = vpop.trf.xlu0
    %v630 = vpop.trf.xlu0
    %v631 = vpop.trf.xlu0
    %v632 = vpop.trf.xlu0
    %v633 = vpop.trf.xlu0
    %v634 = vpop.trf.xlu0
    %v635 = vpop.trf.xlu0
    %v636 = vpop.trf.xlu0
    %v637 = vpop.trf.xlu0
    %v638 = vpop.trf.xlu0
    %v639 = vpop.trf.xlu0
    %v640 = vpop.trf.xlu0
    %v641 = vpop.trf.xlu0
    %v642 = vpop.trf.xlu0
    %v643 = vpop.trf.xlu0
    %v644 = vpop.trf.xlu0
    %v645 = vld [vmem:[%s7] sm:$0xff]
    %v646 = vld [vmem:[%s7 + $0x8] sm:$0xff]
    %v647 = vld [vmem:[%s7 + $0x10] sm:$0xff]
    %v648 = vld [vmem:[%s7 + $0x18] sm:$0xff]
    %v649 = vld [vmem:[%s9] sm:$0x1]
    %v650 = vlaneseq
    %v651 = vshrl.u32 %v650, 7
    %v652 = vsub.s32 0, %v651
    %v653 = vrot.slane %v649, %v652
    %654 = vmatprep.subr.mxu0 0.0
    %655 = vmatpush1.msra.mxu0 %v645
    %656 = vmatprep.subr.mxu0 0.0
    %657 = vmatpush1.msra.mxu0 %v646
    %658 = vmatprep.subr.mxu0 0.0
    %659 = vmatpush1.msra.mxu0 %v647
    %660 = vmatprep.subr.mxu0 0.0
    %661 = vmatpush1.msra.mxu0 %v648
    %662 = vmatprep.subr.mxu0 0.0
    %663 = vmatpush1.msra.mxu0 0.0
    %664 = vmatprep.subr.mxu0 0.0
    %665 = vmatpush1.msra.mxu0 0.0
    %666 = vmatprep.subr.mxu0 0.0
    %667 = vmatpush1.msra.mxu0 0.0
    %668 = vmatprep.subr.mxu0 0.0
    %669 = vmatpush1.msra.mxu0 0.0
    %670 = vmatprep.subr.mxu0 0.0
    %671 = vmatpush1.msra.mxu0 0.0
    %672 = vmatprep.subr.mxu0 0.0
    %673 = vmatpush1.msra.mxu0 0.0
    %674 = vmatprep.subr.mxu0 0.0
    %675 = vmatpush1.msra.mxu0 0.0
    %676 = vmatprep.subr.mxu0 0.0
    %677 = vmatpush1.msra.mxu0 0.0
    %678 = vmatprep.subr.mxu0 0.0
    %679 = vmatpush1.msra.mxu0 0.0
    %680 = vmatprep.subr.mxu0 0.0
    %681 = vmatpush1.msra.mxu0 0.0
    %682 = vmatprep.subr.mxu0 0.0
    %683 = vmatpush1.msra.mxu0 0.0
    %684 = vmatprep.subr.mxu0 0.0
    %685 = vmatpush1.msra.mxu0 0.0
    %686 = vmatprep.subr.mxu0 0.0
    %687 = vmatpush1.msra.mxu0 0.0
    %688 = vmatprep.subr.mxu0 0.0
    %689 = vmatpush1.msra.mxu0 0.0
    %690 = vmatprep.subr.mxu0 0.0
    %691 = vmatpush1.msra.mxu0 0.0
    %692 = vmatprep.subr.mxu0 0.0
    %693 = vmatpush1.msra.mxu0 0.0
    %694 = vmatprep.subr.mxu0 0.0
    %695 = vmatpush1.msra.mxu0 0.0
    %696 = vmatprep.subr.mxu0 0.0
    %697 = vmatpush1.msra.mxu0 0.0
    %698 = vmatprep.subr.mxu0 0.0
    %699 = vmatpush1.msra.mxu0 0.0
    %700 = vmatprep.subr.mxu0 0.0
    %701 = vmatpush1.msra.mxu0 0.0
    %702 = vmatprep.subr.mxu0 0.0
    %703 = vmatpush1.msra.mxu0 0.0
    %704 = vmatprep.subr.mxu0 0.0
    %705 = vmatpush1.msra.mxu0 0.0
    %706 = vmatprep.subr.mxu0 0.0
    %707 = vmatpush1.msra.mxu0 0.0
    %708 = vmatprep.subr.mxu0 0.0
    %709 = vmatpush1.msra.mxu0 0.0
    %710 = vmatprep.subr.mxu0 0.0
    %711 = vmatpush1.msra.mxu0 0.0
    %712 = vmatprep.subr.mxu0 0.0
    %713 = vmatpush1.msra.mxu0 0.0
    %714 = vmatprep.subr.mxu0 0.0
    %715 = vmatpush1.msra.mxu0 0.0
    %716 = vmatprep.subr.mxu0 0.0
    %717 = vmatpush1.msra.mxu0 0.0
    %718 = vmatprep.mubr.f32.mxu0 0.0
    %719 = vmatmul.mubr.f32.gmra.mrb[0].mxu0 %v88
    %v720 = vpop.f32.mrb[0].mxu0
    %v721 = vadd.f32 %v653, %v720
    %v722 = vpop.f32.mrb[0].mxu0
    %723 = vmatprep.mubr.f32.mxu0 0.0
    %724 = vmatmul.mubr.f32.gmra.mrb[0].mxu0 %v91
    %v725 = vpop.f32.mrb[0].mxu0
    %v726 = vadd.f32 %v653, %v725
    %v727 = vpop.f32.mrb[0].mxu0
    %728 = vmatprep.mubr.f32.mxu0 0.0
    %729 = vmatmul.mubr.f32.gmra.mrb[0].mxu0 %v94
    %v730 = vpop.f32.mrb[0].mxu0
    %v731 = vadd.f32 %v653, %v730
    %v732 = vpop.f32.mrb[0].mxu0
    %733 = vmatprep.mubr.f32.mxu0 0.0
    %734 = vmatmul.mubr.f32.gmra.mrb[0].mxu0 %v97
    %v735 = vpop.f32.mrb[0].mxu0
    %v736 = vadd.f32 %v653, %v735
    %v737 = vpop.f32.mrb[0].mxu0
    %738 = vdwg.mxu0
    %s739 = scalar_lea.vmem [#allocation8], %s569
    %v740 = vld [vmem:[%s739] sm:$0x1]
    %s741 = scalar_lea.vmem [#allocation8], %s570
    %v742 = vld [vmem:[%s741] sm:$0x1]
    %vm743 = vcmask 253952
    %v744 = vsel %vm743, %v590, 0.0
    %745 = vadd.xlane.f32.xlu0 %v744
    %v746 = vpop.xlane.xlu0 %745
    %v747 = vrot.slane %v746, 4
    %v748 = vadd.f32 %v746, %v747
    %v749 = vrot.slane %v748, 2
    %v750 = vadd.f32 %v748, %v749
    %v751 = vrot.slane %v750, 1
    %v752 = vadd.f32 %v750, %v751
    %s753 = vtos %v752
    %p754 = scmp.gt.f32.partialorder %s753, 0.0
    %v755 = vrot.slane %v590, 1
    %v757 = vsel %vm743, %v755, 0.0
    %758 = vadd.xlane.f32.xlu0 %v757
    %v759 = vpop.xlane.xlu0 %758
    %v760 = vrot.slane %v759, 4
    %v761 = vadd.f32 %v759, %v760
    %v762 = vrot.slane %v761, 2
    %v763 = vadd.f32 %v761, %v762
    %v764 = vrot.slane %v763, 1
    %v765 = vadd.f32 %v763, %v764
    %s766 = vtos %v765
    %p767 = scmp.gt.f32.partialorder %s766, 0.0
    %769 = vset.pattern.permute.xlu0 0
    %770 = vperm.xlu0 %769, %v629
    %v771 = vpop.permute.xlu0 %770
    %774 = vset.pattern.permute.xlu0 0
    %775 = vperm.xlu0 %774, %v630
    %v776 = vpop.permute.xlu0 %775
    %779 = vset.pattern.permute.xlu0 0
    %780 = vperm.xlu0 %779, %v631
    %v781 = vpop.permute.xlu0 %780
    %784 = vset.pattern.permute.xlu0 0
    %785 = vperm.xlu0 %784, %v632
    %v786 = vpop.permute.xlu0 %785
    %v788 = vmul.f32 %v771, %v721
    %v789 = vmul.f32 %v776, %v726
    %v790 = vmul.f32 %v781, %v731
    %v791 = vmul.f32 %v786, %v736
    %v792 = vxor.u32 %v788, 2147483648
    %v793 = vxor.u32 %v789, 2147483648
    %v794 = vxor.u32 %v790, 2147483648
    %v795 = vxor.u32 %v791, 2147483648
    %v796 = vmul.f32 %v792, 1.442695
    %v797 = vpow.pop %v796
    %v798 = vmul.f32 %v793, 1.442695
    %v799 = vpow.pop %v798
    %v800 = vmul.f32 %v794, 1.442695
    %v801 = vpow.pop %v800
    %v802 = vmul.f32 %v795, 1.442695
    %v803 = vpow.pop %v802
    %v804 = vadd.f32 %v797, 1.0
    %v805 = vadd.f32 %v799, 1.0
    %v806 = vadd.f32 %v801, 1.0
    %v807 = vadd.f32 %v803, 1.0
    %v808 = vrcp.pop %v804
    %v809 = vmul.f32 1.0, %v808
    %v810 = vrcp.pop %v805
    %v811 = vmul.f32 1.0, %v810
    %v812 = vrcp.pop %v806
    %v813 = vmul.f32 1.0, %v812
    %v814 = vrcp.pop %v807
    %v815 = vmul.f32 1.0, %v814
    %vm816 = vcmp.gt.f32.partialorder %v629, 0.0
    %vm817 = vcmp.gt.f32.partialorder %v630, 0.0
    %vm818 = vcmp.gt.f32.partialorder %v631, 0.0
    %vm819 = vcmp.gt.f32.partialorder %v632, 0.0
    %v820 = vsel %vm816, 1, 0
    %v821 = vsel %vm817, 1, 0
    %v822 = vsel %vm818, 1, 0
    %v823 = vsel %vm819, 1, 0
    %824 = vset.pattern.permute.xlu0 2
    %825 = vperm.xlu0 %824, %v820
    %v826 = vpop.permute.xlu0 %825
    %827 = vset.pattern.permute.xlu0 2
    %828 = vperm.xlu0 %827, %v821
    %v829 = vpop.permute.xlu0 %828
    %830 = vset.pattern.permute.xlu0 2
    %831 = vperm.xlu0 %830, %v822
    %v832 = vpop.permute.xlu0 %831
    %833 = vset.pattern.permute.xlu0 2
    %834 = vperm.xlu0 %833, %v823
    %v835 = vpop.permute.xlu0 %834
    %vm836 = vcmp.eq.s32.totalorder %v826, 1
    %vm837 = vcmp.eq.s32.totalorder %v829, 1
    %vm838 = vcmp.eq.s32.totalorder %v832, 1
    %vm839 = vcmp.eq.s32.totalorder %v835, 1
    %v840 = vsel %vm836, %v809, -1e+30
    %v841 = vsel %vm837, %v811, -1e+30
    %v842 = vsel %vm838, %v813, -1e+30
    %v843 = vsel %vm839, %v815, -1e+30
    %v844 = vsel %vm86, %v840, -inf
    %v845 = vsel %vm86, %v841, -inf
    %v846 = vsel %vm86, %v842, -inf
    %v847 = vsel %vm86, %v843, -inf
    %v848 = vmax.f32 %v844, %v845
    %v849 = vmax.f32 %v846, %v847
    %v850 = vmax.f32 %v848, %v849
    %v851 = vrot.slane %v850, 4
    %v852 = vmax.f32 %v850, %v851
    %v853 = vrot.slane %v852, 2
    %v854 = vmax.f32 %v852, %v853
    %v855 = vrot.slane %v854, 1
    %v856 = vmax.f32 %v854, %v855
    %s857 = scalar_select %p754, 1, 0
    %v858 = vstv %s857
    %vm859 = vcmp.eq.s32.totalorder %v858, 1
    %v860 = vsel %vm859, %v856, %v740
    %861 = vset.pattern.permute.xlu0 1
    %862 = vperm.xlu0 %861, %v629
    %v863 = vpop.permute.xlu0 %862
    %865 = vset.pattern.permute.xlu0 1
    %866 = vperm.xlu0 %865, %v630
    %v867 = vpop.permute.xlu0 %866
    %869 = vset.pattern.permute.xlu0 1
    %870 = vperm.xlu0 %869, %v631
    %v871 = vpop.permute.xlu0 %870
    %873 = vset.pattern.permute.xlu0 1
    %874 = vperm.xlu0 %873, %v632
    %v875 = vpop.permute.xlu0 %874
    %v877 = vmul.f32 %v863, %v721
    %v878 = vmul.f32 %v867, %v726
    %v879 = vmul.f32 %v871, %v731
    %v880 = vmul.f32 %v875, %v736
    %v881 = vxor.u32 %v877, 2147483648
    %v882 = vxor.u32 %v878, 2147483648
    %v883 = vxor.u32 %v879, 2147483648
    %v884 = vxor.u32 %v880, 2147483648
    %v885 = vmul.f32 %v881, 1.442695
    %v886 = vpow.pop %v885
    %v887 = vmul.f32 %v882, 1.442695
    %v888 = vpow.pop %v887
    %v889 = vmul.f32 %v883, 1.442695
    %v890 = vpow.pop %v889
    %v891 = vmul.f32 %v884, 1.442695
    %v892 = vpow.pop %v891
    %v893 = vadd.f32 %v886, 1.0
    %v894 = vadd.f32 %v888, 1.0
    %v895 = vadd.f32 %v890, 1.0
    %v896 = vadd.f32 %v892, 1.0
    %v897 = vrcp.pop %v893
    %v898 = vmul.f32 1.0, %v897
    %v899 = vrcp.pop %v894
    %v900 = vmul.f32 1.0, %v899
    %v901 = vrcp.pop %v895
    %v902 = vmul.f32 1.0, %v901
    %v903 = vrcp.pop %v896
    %v904 = vmul.f32 1.0, %v903
    %905 = vset.pattern.permute.xlu0 3
    %906 = vperm.xlu0 %905, %v820
    %v907 = vpop.permute.xlu0 %906
    %908 = vset.pattern.permute.xlu0 3
    %909 = vperm.xlu0 %908, %v821
    %v910 = vpop.permute.xlu0 %909
    %911 = vset.pattern.permute.xlu0 3
    %912 = vperm.xlu0 %911, %v822
    %v913 = vpop.permute.xlu0 %912
    %914 = vset.pattern.permute.xlu0 3
    %915 = vperm.xlu0 %914, %v823
    %v916 = vpop.permute.xlu0 %915
    %vm917 = vcmp.eq.s32.totalorder %v907, 1
    %vm918 = vcmp.eq.s32.totalorder %v910, 1
    %vm919 = vcmp.eq.s32.totalorder %v913, 1
    %vm920 = vcmp.eq.s32.totalorder %v916, 1
    %v921 = vsel %vm917, %v898, -1e+30
    %v922 = vsel %vm918, %v900, -1e+30
    %v923 = vsel %vm919, %v902, -1e+30
    %v924 = vsel %vm920, %v904, -1e+30
    %v925 = vsel %vm86, %v921, -inf
    %v926 = vsel %vm86, %v922, -inf
    %v927 = vsel %vm86, %v923, -inf
    %v928 = vsel %vm86, %v924, -inf
    %v929 = vmax.f32 %v925, %v926
    %v930 = vmax.f32 %v927, %v928
    %v931 = vmax.f32 %v929, %v930
    %v932 = vrot.slane %v931, 4
    %v933 = vmax.f32 %v931, %v932
    %v934 = vrot.slane %v933, 2
    %v935 = vmax.f32 %v933, %v934
    %v936 = vrot.slane %v935, 1
    %v937 = vmax.f32 %v935, %v936
    %s938 = scalar_select %p767, 1, 0
    %v939 = vstv %s938
    %vm940 = vcmp.eq.s32.totalorder %v939, 1
    %v941 = vsel %vm940, %v937, %v742
    %v943 = vrot.slane %v860, 7
    %v945 = vsel %vm578, %v941, %v943
    %v947 = vrot.slane %v742, 7
    %v949 = vsel %vm578, %v740, %v947
    %951 = vrot.lane.b32.xlu0 %v949, 32
    %v952 = vpop.permute.xlu0 %951
    %v954 = vsel %vm86, %v945, %v952
    %v955 = vld [vmem:[%s9 + $0x2] sm:$0x1]
    %v956 = vld [vmem:[%s3] sm:$0x1]
    %958 = vset.pattern.permute.xlu0 4
    %959 = vperm.xlu0 %958, %v956
    %v960 = vpop.permute.xlu0 %959
    %v962 = vmul.f32 %v960, %v955
    %963 = vset.pattern.permute.xlu0 5
    %964 = vperm.xlu0 %963, %v956
    %v965 = vpop.permute.xlu0 %964
    %v967 = vmul.f32 %v965, %v955
    %v969 = vrot.slane %v967, 7
    %v971 = vsel %vm578, %v962, %v969
    %v972 = vld [vmem:[%s7 + $0x20] sm:$0xff]
    %v973 = vld [vmem:[%s7 + $0x28] sm:$0xff]
    %v974 = vld [vmem:[%s7 + $0x30] sm:$0xff]
    %v975 = vld [vmem:[%s7 + $0x38] sm:$0xff]
    %v976 = vld [vmem:[%s7 + $0x40] sm:$0xff]
    %v977 = vld [vmem:[%s7 + $0x48] sm:$0xff]
    %v978 = vld [vmem:[%s7 + $0x50] sm:$0xff]
    %v979 = vld [vmem:[%s7 + $0x58] sm:$0xff]
    %v980 = vld [vmem:[%s9 + $0x1] sm:$0x1]
    %v981 = vlaneseq
    %v982 = vshrl.u32 %v981, 7
    %v983 = vsub.s32 0, %v982
    %v984 = vrot.slane %v980, %v983
    %vm985 = vcmask 523264
    %v987 = vsel %vm985, %v954, 0
    %989 = vmatprep.subr.mxu0 0.0
    %990 = vmatpush1.msra.mxu0 %v972
    %991 = vmatprep.subr.mxu0 0.0
    %992 = vmatpush1.msra.mxu0 %v973
    %993 = vmatprep.subr.mxu0 0.0
    %994 = vmatpush1.msra.mxu0 %v974
    %995 = vmatprep.subr.mxu0 0.0
    %996 = vmatpush1.msra.mxu0 %v975
    %997 = vmatprep.subr.mxu0 0.0
    %998 = vmatpush1.msra.mxu0 %v976
    %999 = vmatprep.subr.mxu0 0.0
    %1000 = vmatpush1.msra.mxu0 %v977
    %1001 = vmatprep.subr.mxu0 0.0
    %1002 = vmatpush1.msra.mxu0 %v978
    %1003 = vmatprep.subr.mxu0 0.0
    %1004 = vmatpush1.msra.mxu0 %v979
    %1005 = vmatprep.subr.mxu0 0.0
    %1006 = vmatpush1.msra.mxu0 0.0
    %1007 = vmatprep.subr.mxu0 0.0
    %1008 = vmatpush1.msra.mxu0 0.0
    %1009 = vmatprep.subr.mxu0 0.0
    %1010 = vmatpush1.msra.mxu0 0.0
    %1011 = vmatprep.subr.mxu0 0.0
    %1012 = vmatpush1.msra.mxu0 0.0
    %1013 = vmatprep.subr.mxu0 0.0
    %1014 = vmatpush1.msra.mxu0 0.0
    %1015 = vmatprep.subr.mxu0 0.0
    %1016 = vmatpush1.msra.mxu0 0.0
    %1017 = vmatprep.subr.mxu0 0.0
    %1018 = vmatpush1.msra.mxu0 0.0
    %1019 = vmatprep.subr.mxu0 0.0
    %1020 = vmatpush1.msra.mxu0 0.0
    %1021 = vmatprep.subr.mxu0 0.0
    %1022 = vmatpush1.msra.mxu0 0.0
    %1023 = vmatprep.subr.mxu0 0.0
    %1024 = vmatpush1.msra.mxu0 0.0
    %1025 = vmatprep.subr.mxu0 0.0
    %1026 = vmatpush1.msra.mxu0 0.0
    %1027 = vmatprep.subr.mxu0 0.0
    %1028 = vmatpush1.msra.mxu0 0.0
    %1029 = vmatprep.subr.mxu0 0.0
    %1030 = vmatpush1.msra.mxu0 0.0
    %1031 = vmatprep.subr.mxu0 0.0
    %1032 = vmatpush1.msra.mxu0 0.0
    %1033 = vmatprep.subr.mxu0 0.0
    %1034 = vmatpush1.msra.mxu0 0.0
    %1035 = vmatprep.subr.mxu0 0.0
    %1036 = vmatpush1.msra.mxu0 0.0
    %1037 = vmatprep.subr.mxu0 0.0
    %1038 = vmatpush1.msra.mxu0 0.0
    %1039 = vmatprep.subr.mxu0 0.0
    %1040 = vmatpush1.msra.mxu0 0.0
    %1041 = vmatprep.subr.mxu0 0.0
    %1042 = vmatpush1.msra.mxu0 0.0
    %1043 = vmatprep.subr.mxu0 0.0
    %1044 = vmatpush1.msra.mxu0 0.0
    %1045 = vmatprep.subr.mxu0 0.0
    %1046 = vmatpush1.msra.mxu0 0.0
    %1047 = vmatprep.subr.mxu0 0.0
    %1048 = vmatpush1.msra.mxu0 0.0
    %1049 = vmatprep.subr.mxu0 0.0
    %1050 = vmatpush1.msra.mxu0 0.0
    %1051 = vmatprep.subr.mxu0 0.0
    %1052 = vmatpush1.msra.mxu0 0.0
    %1053 = vmatprep.mubr.f32.mxu0 0.0
    %1054 = vmatmul.mubr.f32.gmra.mrb[0].mxu0 %v987
    %v1055 = vpop.f32.mrb[0].mxu0
    %v1056 = vadd.f32 %v984, %v1055
    %v1057 = vpop.f32.mrb[0].mxu0
    %1058 = vdwg.mxu0
    %v1059 = vadd.f32 %v1056, %v971
    %v1060 = vxor.u32 %v1059, 2147483648
    %v1061 = vmul.f32 %v1060, 1.442695
    %v1062 = vpow.pop %v1061
    %v1063 = vadd.f32 %v1062, 1.0
    %v1064 = vrcp.pop %v1063
    %v1065 = vmul.f32 1.0, %v1064
    %1066 = vst.msk [vmem:[#allocation10] sm:$0xff] %vm86, %v78
    %1067 = vst.msk [vmem:[#allocation10 + $0x8] sm:$0xff] %vm86, %v79
    %1068 = vst.msk [vmem:[#allocation10 + $0x10] sm:$0xff] %vm86, %v80
    %1069 = vst.msk [vmem:[#allocation10 + $0x18] sm:$0xff] %vm86, %v81
    %s1070 = scalar_lea.vmem [#allocation10], %s569
    %1071 = vst.msk [vmem:[%s1070] sm:$0x1] %vm743, %v1065
    %s1072 = scalar_lea.vmem [#allocation10], %s570
    %vm1073 = vcmask 254977
    %1074 = vst.msk [vmem:[%s1072 - $0x1] sm:$0x2] %vm1073, %v1065
    %vm1075 = vcmp.eq.s32.totalorder %v185, 0
    %vm1076 = vcmp.eq.s32.totalorder %v185, 1
    %v1077 = vstv %s568
    %v1078 = vsel %vm1076, %v1077, 0.0
    %v1079 = vstv %s542
    %v1080 = vsel %vm1075, %v1079, %v1078
    %1081 = vst [vmem:[#allocation9] sm:$0x1] %v1080
    // Predicated region
    $region54: #{tpu_custom_call.1} parent=1 // pred_check
      _
    $region55: #{tpu_custom_call.1} parent=1 // pred_check_branch
      %1083 = sbr.rel (0) target = $region57
    $region56: #{tpu_custom_call.1} parent=1 // pred_region
      %s1085 = ssub.s32 16, 16
      %1086 = vsyncadd [#allocation4], %s1085
      %s1088 = sshll.u32 [#allocation9], 4
      %s1089 = int_to_ptr.vmem [resolvable:$true] %s1088
      %1091 = dma.vmem_to_hbm [thread:$0]  %s1089, 16, %s10, [#allocation4]
    $region57: #{tpu_custom_call.1} parent=1 // pred_fallthru
      _
    // Predicated region
    $region58: #{tpu_custom_call.1} parent=1 // pred_check
      _
    $region59: #{tpu_custom_call.1} parent=1 // pred_check_branch
      %1093 = sbr.rel (0) target = $region61
    $region60: #{tpu_custom_call.1} parent=1 // pred_region
      %s1095 = ssub.s32 512, 512
      %1096 = vsyncadd [#allocation11], %s1095
      %s1097 = sshll.u32 [#allocation10], 4
      %s1098 = int_to_ptr.vmem [resolvable:$true] %s1097
      %1103 = dma.vmem_to_hbm [thread:$0]  %s1098, 512, %s11, [#allocation11], 128, 128, 8
    $region61: #{tpu_custom_call.1} parent=1 // pred_fallthru
      _
    // Predicated region
    $region62: #{tpu_custom_call.1} parent=1 // pred_check
      _
    $region63: #{tpu_custom_call.1} parent=1 // pred_check_branch
      %1105 = sbr.rel (0) target = $region65
    $region64: #{tpu_custom_call.1} parent=1 // pred_region
      %1106 = dma.done [#allocation4], 16
    $region65: #{tpu_custom_call.1} parent=1 // pred_fallthru
      _
    // Predicated region
    $region66: #{tpu_custom_call.1} parent=1 // pred_check
      _
    $region67: #{tpu_custom_call.1} parent=1 // pred_check_branch
      %1108 = sbr.rel (0) target = $region69
    $region68: #{tpu_custom_call.1} parent=1 // pred_region
      %1109 = dma.done [#allocation11], 512
    $region69: #{tpu_custom_call.1} parent=1 // pred_fallthru
      _
    %1110 = vsyncpa [#allocation3], 1
    %1111 = vsyncpa [#allocation4], 1
    %1112 = vsyncpa [#allocation11], 1
    %1113 = vsyncpa [#allocation5], 1
    %1114 = vsyncpa [#allocation7], 1

</llo_original>
